<compile_context>
chip_gen: v7x
topology: tpu7x:2x2x1
jax: 0.10.0
libtpu: 0.0.40
codegen_flags: <defaults>
</compile_context>

<pallas_src>
import jax
import jax.numpy as jnp
import numpy as np
from jax.experimental import pallas as pl
from jax.experimental.pallas import tpu as pltpu


# ----------------------------- Pallas kernel ------------------------------- #

def _decoder_kernel(x_ref, l1_ref, m1_ref, b1_ref, l2_ref, m2_ref, b2_ref, o_ref):
    """Whole decoder for one batch element.

    x_ref : (1, H, C1in*W)           activation, (row, chan*col) layout
    lN_ref: (KHn, HnOut, HnIn)       0/1 row dilation/shift operators
    mN_ref: (KHn, CnIn*WnIn, CnOut*WnOut)  weight-folded column operators
    bN_ref: (1, CnOut*WnOut)         bias broadcast rows
    o_ref : (1, C2out, H2out, W2out) final output
    """
    f32 = jnp.float32
    x = x_ref[0]                                            # (H, C1in*W)

    # ---- layer 1: ConvTranspose2d + bias + ReLU, output layout (p, c*W1 + q)
    kh1 = l1_ref.shape[0]
    acc1 = jnp.zeros((l1_ref.shape[1], m1_ref.shape[2]), f32)
    for kh in range(kh1):
        t = jnp.dot(l1_ref[kh], x, preferred_element_type=f32)
        acc1 = acc1 + jnp.dot(t, m1_ref[kh], preferred_element_type=f32)
    h = jnp.maximum(acc1 + b1_ref[...], 0.0)                # (H1out, C1out*W1out)

    # ---- layer 2: ConvTranspose2d + bias
    kh2 = l2_ref.shape[0]
    acc2 = jnp.zeros((l2_ref.shape[1], m2_ref.shape[2]), f32)
    for kh in range(kh2):
        t = jnp.dot(l2_ref[kh], h, preferred_element_type=f32)
        acc2 = acc2 + jnp.dot(t, m2_ref[kh], preferred_element_type=f32)
    y = acc2 + b2_ref[...]                                  # (H2out, C2out*W2out)

    c2out = o_ref.shape[1]
    w2out = o_ref.shape[3]
    for o in range(c2out):
        o_ref[0, o] = y[:, o * w2out:(o + 1) * w2out].astype(o_ref.dtype)


# ------------------------------ XLA-side prep ------------------------------ #

def _prep_layer(w, b, h_in, w_in, stride, padding, output_padding,
                dtype=jnp.float32):
    """Build the per-kh row operators L, the weight-folded column operators M and
    the bias row for one ConvTranspose2d layer (PyTorch semantics)."""
    cin, cout, kh_sz, kw_sz = w.shape
    sh, sw = stride
    ph, pw = padding
    oph, opw = output_padding
    h_out = (h_in - 1) * sh - 2 * ph + kh_sz + oph
    w_out = (w_in - 1) * sw - 2 * pw + kw_sz + opw
    lo_h = kh_sz - 1 - ph
    lo_w = kw_sz - 1 - pw

    # L[kh, p, i] = 1  iff  p == sh*i + lo_h - kh   (rows outside [0, Hout) dropped)
    i = jnp.arange(h_in)
    p = jnp.arange(h_out)
    kh = jnp.arange(kh_sz)
    L = (p[None, :, None] ==
         sh * i[None, None, :] + lo_h - kh[:, None, None]).astype(dtype)

    # Flipped weights: Wf[kh, kw, o, c] = w[c, o, KH-1-kh, KW-1-kw]
    wf = jnp.transpose(w[:, :, ::-1, ::-1], (2, 3, 1, 0)).astype(dtype)
    # sel[kw, j, q] = 1 iff q == sw*j + lo_w - kw
    j = jnp.arange(w_in)
    q = jnp.arange(w_out)
    kw = jnp.arange(kw_sz)
    sel = (q[None, None, :] ==
           sw * j[None, :, None] + lo_w - kw[:, None, None]).astype(dtype)
    # M[kh, c*Win + j, o*Wout + q] = sum_kw Wf[kh, kw, o, c] * sel[kw, j, q]
    M = jnp.einsum('hkoc,kjq->hcjoq', wf, sel).reshape(
        kh_sz, cin * w_in, cout * w_out)

    brow = jnp.repeat(b.astype(dtype), w_out)[None, :]       # (1, Cout*Wout)
    return L, M, brow, h_out, w_out, cout


@jax.jit
def decoder_forward(x, params):
    """PyTorch Decoder.forward: x -> relu(up1(x)) -> up2, as one Pallas kernel."""
    B, c_in, H, W = x.shape
    L1, M1, b1r, H1, W1, C1 = _prep_layer(
        params["w1"], params["b1"], H, W, (2, 2), (1, 2), (0, 1))
    L2, M2, b2r, H2, W2, C2 = _prep_layer(
        params["w2"], params["b2"], H1, W1, (2, 2), (1, 2), (0, 1))

    # Activation in (batch, row, chan*col) layout (tiny: 16 KB).
    xr = jnp.transpose(x.astype(jnp.float32), (0, 2, 1, 3)).reshape(B, H, c_in * W)

    out = pl.pallas_call(
        _decoder_kernel,
        out_shape=jax.ShapeDtypeStruct((B, C2, H2, W2), jnp.float32),
        grid=(B,),
        in_specs=[
            pl.BlockSpec((1, H, c_in * W), lambda b: (b, 0, 0)),   # per-batch slab
            pl.BlockSpec(L1.shape, lambda b: (0, 0, 0)),           # resident operators
            pl.BlockSpec(M1.shape, lambda b: (0, 0, 0)),
            pl.BlockSpec(b1r.shape, lambda b: (0, 0)),
            pl.BlockSpec(L2.shape, lambda b: (0, 0, 0)),
            pl.BlockSpec(M2.shape, lambda b: (0, 0, 0)),
            pl.BlockSpec(b2r.shape, lambda b: (0, 0)),
        ],
        out_specs=pl.BlockSpec((1, C2, H2, W2), lambda b: (b, 0, 0, 0)),
        compiler_params=pltpu.CompilerParams(
            dimension_semantics=("parallel",)),
    )(xr, L1, M1, b1r, L2, M2, b2r)
    return out


# ------------------------------- reference --------------------------------- #

def _conv_transpose2d_ref(x, weight, bias, stride, padding, output_padding):
    """Scatter-form ConvTranspose2d (independent of the kernel's construction)."""
    x = np.asarray(x, np.float64)
    w = np.asarray(weight, np.float64)
    b = np.asarray(bias, np.float64)
    B, Cin, H, W = x.shape
    _, Cout, KH, KW = w.shape
    sh, sw = stride
    ph, pw = padding
    oph, opw = output_padding
    Hout = (H - 1) * sh - 2 * ph + KH + oph
    Wout = (W - 1) * sw - 2 * pw + KW + opw
    Hf = (H - 1) * sh + KH + oph
    Wf = (W - 1) * sw + KW + opw
    full = np.zeros((B, Cout, Hf, Wf), np.float64)
    for i in range(H):
        for j in range(W):
            contrib = np.einsum('bc,cokl->bokl', x[:, :, i, j], w)
            full[:, :, i * sh:i * sh + KH, j * sw:j * sw + KW] += contrib
    out = full[:, :, ph:ph + Hout, pw:pw + Wout]
    return out + b[None, :, None, None]


def decoder_reference(x, params):
    h = _conv_transpose2d_ref(x, params["w1"], params["b1"], (2, 2), (1, 2), (0, 1))
    h = np.maximum(h, 0.0)
    return _conv_transpose2d_ref(h, params["w2"], params["b2"], (2, 2), (1, 2), (0, 1))


# --------------------------------- params ---------------------------------- #

def init_params(key, channels):
    """Deterministic synthetic params matching nn.ConvTranspose2d shapes."""
    c2 = channels * 2
    b1 = 1.0 / float(np.sqrt(c2 * 3 * 5))
    b2 = 1.0 / float(np.sqrt(channels * 3 * 2))
    k1, k2, k3, k4 = jax.random.split(key, 4)
    u = lambda k, shape, b: jax.random.uniform(k, shape, jnp.float32, -b, b)
    return dict(
        w1=u(k1, (c2, channels, 3, 5), b1), b1=u(k2, (channels,), b1),
        w2=u(k3, (channels, 2, 3, 2), b2), b2=u(k4, (2,), b2),
    )


if __name__ == "__main__":
    B, channels, Fdim, Tdim = 2, 4, 16, 16        # x: (B, 2*channels, F, T)
    key = jax.random.PRNGKey(0)
    kx, kp = jax.random.split(key)
    x = jax.random.normal(kx, (B, channels * 2, Fdim, Tdim), jnp.float32)
    params = init_params(kp, channels)

    out = jax.block_until_ready(decoder_forward(x, params))

    H1, W1 = 2 * Fdim - 1, 2 * Tdim               # up1: (31, 32)
    H2, W2 = 2 * H1 - 1, 2 * W1 - 3               # up2: (61, 61)
    assert out.shape == (B, 2, H2, W2), out.shape

    ref = decoder_reference(np.asarray(x), {k: np.asarray(v) for k, v in params.items()})
    np.testing.assert_allclose(np.asarray(out), ref, rtol=5e-4, atol=5e-4)

    print("KERNEL_OK")
</pallas_src>

<mosaic_0001>
module attributes {stable_mosaic.version = 11 : i64} {
  func.func @_decoder_kernel(%arg0: i32, %arg1: memref<1x16x128xf32, #tpu.memory_space<vmem>>, %arg2: memref<3x31x16xf32, #tpu.memory_space<vmem>>, %arg3: memref<3x128x128xf32, #tpu.memory_space<vmem>>, %arg4: memref<1x128xf32, #tpu.memory_space<vmem>>, %arg5: memref<3x61x31xf32, #tpu.memory_space<vmem>>, %arg6: memref<3x128x122xf32, #tpu.memory_space<vmem>>, %arg7: memref<1x122xf32, #tpu.memory_space<vmem>>, %arg8: memref<1x2x61x61xf32, #tpu.memory_space<vmem>>) attributes {dimension_semantics = [#tpu.dimension_semantics<parallel>], iteration_bounds = array<i64: 2>, scalar_prefetch = 0 : i64, scratch_operands = 0 : i64, tpu.core_type = #tpu.core_type<tc>, window_params = [{transform_indices = @transform_0, window_bounds = array<i64: 1, 16, 128>}, {pipeline_mode = #tpu.pipeline_mode<synchronous>, transform_indices = @transform_1, window_bounds = array<i64: 3, 31, 16>}, {pipeline_mode = #tpu.pipeline_mode<synchronous>, transform_indices = @transform_2, window_bounds = array<i64: 3, 128, 128>}, {pipeline_mode = #tpu.pipeline_mode<synchronous>, transform_indices = @transform_3, window_bounds = array<i64: 1, 128>}, {pipeline_mode = #tpu.pipeline_mode<synchronous>, transform_indices = @transform_4, window_bounds = array<i64: 3, 61, 31>}, {pipeline_mode = #tpu.pipeline_mode<synchronous>, transform_indices = @transform_5, window_bounds = array<i64: 3, 128, 122>}, {pipeline_mode = #tpu.pipeline_mode<synchronous>, transform_indices = @transform_6, window_bounds = array<i64: 1, 122>}, {transform_indices = @transform_7, window_bounds = array<i64: 1, 2, 61, 61>}]} {
    %c0 = arith.constant 0 : index
    %c0_0 = arith.constant 0 : index
    %c0_1 = arith.constant 0 : index
    %0 = vector.load %arg1[%c0, %c0_0, %c0_1] : memref<1x16x128xf32, #tpu.memory_space<vmem>>, vector<1x16x128xf32>
    %1 = vector.shape_cast %0 : vector<1x16x128xf32> to vector<16x128xf32>
    %cst = arith.constant 0.000000e+00 : f32
    %2 = vector.broadcast %cst : f32 to vector<31x128xf32>
    %c0_2 = arith.constant 0 : index
    %c0_3 = arith.constant 0 : index
    %c0_4 = arith.constant 0 : index
    %3 = vector.load %arg2[%c0_2, %c0_3, %c0_4] : memref<3x31x16xf32, #tpu.memory_space<vmem>>, vector<1x31x16xf32>
    %4 = vector.shape_cast %3 : vector<1x31x16xf32> to vector<31x16xf32>
    %cst_5 = arith.constant dense<0.000000e+00> : vector<31x128xf32>
    %5 = tpu.matmul %4, %1, %cst_5 {dimension_numbers = #tpu.dot_dimension_numbers<[1], [0], [0], [1], [0, 0, 1, 1], [], []>} : vector<31x16xf32>, vector<16x128xf32>, vector<31x128xf32> -> vector<31x128xf32>
    %c0_6 = arith.constant 0 : index
    %c0_7 = arith.constant 0 : index
    %c0_8 = arith.constant 0 : index
    %6 = vector.load %arg3[%c0_6, %c0_7, %c0_8] : memref<3x128x128xf32, #tpu.memory_space<vmem>>, vector<1x128x128xf32>
    %7 = vector.shape_cast %6 : vector<1x128x128xf32> to vector<128x128xf32>
    %cst_9 = arith.constant dense<0.000000e+00> : vector<31x128xf32>
    %8 = tpu.matmul %5, %7, %cst_9 {dimension_numbers = #tpu.dot_dimension_numbers<[1], [0], [0], [1], [0, 0, 1, 1], [], []>} : vector<31x128xf32>, vector<128x128xf32>, vector<31x128xf32> -> vector<31x128xf32>
    %9 = arith.addf %2, %8 : vector<31x128xf32>
    %c1 = arith.constant 1 : index
    %c0_10 = arith.constant 0 : index
    %c0_11 = arith.constant 0 : index
    %10 = vector.load %arg2[%c1, %c0_10, %c0_11] : memref<3x31x16xf32, #tpu.memory_space<vmem>>, vector<1x31x16xf32>
    %11 = vector.shape_cast %10 : vector<1x31x16xf32> to vector<31x16xf32>
    %cst_12 = arith.constant dense<0.000000e+00> : vector<31x128xf32>
    %12 = tpu.matmul %11, %1, %cst_12 {dimension_numbers = #tpu.dot_dimension_numbers<[1], [0], [0], [1], [0, 0, 1, 1], [], []>} : vector<31x16xf32>, vector<16x128xf32>, vector<31x128xf32> -> vector<31x128xf32>
    %c1_13 = arith.constant 1 : index
    %c0_14 = arith.constant 0 : index
    %c0_15 = arith.constant 0 : index
    %13 = vector.load %arg3[%c1_13, %c0_14, %c0_15] : memref<3x128x128xf32, #tpu.memory_space<vmem>>, vector<1x128x128xf32>
    %14 = vector.shape_cast %13 : vector<1x128x128xf32> to vector<128x128xf32>
    %cst_16 = arith.constant dense<0.000000e+00> : vector<31x128xf32>
    %15 = tpu.matmul %12, %14, %cst_16 {dimension_numbers = #tpu.dot_dimension_numbers<[1], [0], [0], [1], [0, 0, 1, 1], [], []>} : vector<31x128xf32>, vector<128x128xf32>, vector<31x128xf32> -> vector<31x128xf32>
    %16 = arith.addf %9, %15 : vector<31x128xf32>
    %c2 = arith.constant 2 : index
    %c0_17 = arith.constant 0 : index
    %c0_18 = arith.constant 0 : index
    %17 = vector.load %arg2[%c2, %c0_17, %c0_18] : memref<3x31x16xf32, #tpu.memory_space<vmem>>, vector<1x31x16xf32>
    %18 = vector.shape_cast %17 : vector<1x31x16xf32> to vector<31x16xf32>
    %cst_19 = arith.constant dense<0.000000e+00> : vector<31x128xf32>
    %19 = tpu.matmul %18, %1, %cst_19 {dimension_numbers = #tpu.dot_dimension_numbers<[1], [0], [0], [1], [0, 0, 1, 1], [], []>} : vector<31x16xf32>, vector<16x128xf32>, vector<31x128xf32> -> vector<31x128xf32>
    %c2_20 = arith.constant 2 : index
    %c0_21 = arith.constant 0 : index
    %c0_22 = arith.constant 0 : index
    %20 = vector.load %arg3[%c2_20, %c0_21, %c0_22] : memref<3x128x128xf32, #tpu.memory_space<vmem>>, vector<1x128x128xf32>
    %21 = vector.shape_cast %20 : vector<1x128x128xf32> to vector<128x128xf32>
    %cst_23 = arith.constant dense<0.000000e+00> : vector<31x128xf32>
    %22 = tpu.matmul %19, %21, %cst_23 {dimension_numbers = #tpu.dot_dimension_numbers<[1], [0], [0], [1], [0, 0, 1, 1], [], []>} : vector<31x128xf32>, vector<128x128xf32>, vector<31x128xf32> -> vector<31x128xf32>
    %23 = arith.addf %16, %22 : vector<31x128xf32>
    %c0_24 = arith.constant 0 : index
    %c0_25 = arith.constant 0 : index
    %24 = vector.load %arg4[%c0_24, %c0_25] : memref<1x128xf32, #tpu.memory_space<vmem>>, vector<1x128xf32>
    %25 = vector.broadcast %24 : vector<1x128xf32> to vector<31x128xf32>
    %26 = arith.addf %23, %25 : vector<31x128xf32>
    %cst_26 = arith.constant 0.000000e+00 : f32
    %27 = vector.broadcast %cst_26 : f32 to vector<31x128xf32>
    %28 = arith.maximumf %26, %27 : vector<31x128xf32>
    %cst_27 = arith.constant 0.000000e+00 : f32
    %29 = vector.broadcast %cst_27 : f32 to vector<61x122xf32>
    %c0_28 = arith.constant 0 : index
    %c0_29 = arith.constant 0 : index
    %c0_30 = arith.constant 0 : index
    %30 = vector.load %arg5[%c0_28, %c0_29, %c0_30] : memref<3x61x31xf32, #tpu.memory_space<vmem>>, vector<1x61x31xf32>
    %31 = vector.shape_cast %30 : vector<1x61x31xf32> to vector<61x31xf32>
    %cst_31 = arith.constant dense<0.000000e+00> : vector<61x128xf32>
    %32 = tpu.matmul %31, %28, %cst_31 {dimension_numbers = #tpu.dot_dimension_numbers<[1], [0], [0], [1], [0, 0, 1, 1], [], []>} : vector<61x31xf32>, vector<31x128xf32>, vector<61x128xf32> -> vector<61x128xf32>
    %c0_32 = arith.constant 0 : index
    %c0_33 = arith.constant 0 : index
    %c0_34 = arith.constant 0 : index
    %33 = vector.load %arg6[%c0_32, %c0_33, %c0_34] : memref<3x128x122xf32, #tpu.memory_space<vmem>>, vector<1x128x122xf32>
    %34 = vector.shape_cast %33 : vector<1x128x122xf32> to vector<128x122xf32>
    %cst_35 = arith.constant dense<0.000000e+00> : vector<61x122xf32>
    %35 = tpu.matmul %32, %34, %cst_35 {dimension_numbers = #tpu.dot_dimension_numbers<[1], [0], [0], [1], [0, 0, 1, 1], [], []>} : vector<61x128xf32>, vector<128x122xf32>, vector<61x122xf32> -> vector<61x122xf32>
    %36 = arith.addf %29, %35 : vector<61x122xf32>
    %c1_36 = arith.constant 1 : index
    %c0_37 = arith.constant 0 : index
    %c0_38 = arith.constant 0 : index
    %37 = vector.load %arg5[%c1_36, %c0_37, %c0_38] : memref<3x61x31xf32, #tpu.memory_space<vmem>>, vector<1x61x31xf32>
    %38 = vector.shape_cast %37 : vector<1x61x31xf32> to vector<61x31xf32>
    %cst_39 = arith.constant dense<0.000000e+00> : vector<61x128xf32>
    %39 = tpu.matmul %38, %28, %cst_39 {dimension_numbers = #tpu.dot_dimension_numbers<[1], [0], [0], [1], [0, 0, 1, 1], [], []>} : vector<61x31xf32>, vector<31x128xf32>, vector<61x128xf32> -> vector<61x128xf32>
    %c1_40 = arith.constant 1 : index
    %c0_41 = arith.constant 0 : index
    %c0_42 = arith.constant 0 : index
    %40 = vector.load %arg6[%c1_40, %c0_41, %c0_42] : memref<3x128x122xf32, #tpu.memory_space<vmem>>, vector<1x128x122xf32>
    %41 = vector.shape_cast %40 : vector<1x128x122xf32> to vector<128x122xf32>
    %cst_43 = arith.constant dense<0.000000e+00> : vector<61x122xf32>
    %42 = tpu.matmul %39, %41, %cst_43 {dimension_numbers = #tpu.dot_dimension_numbers<[1], [0], [0], [1], [0, 0, 1, 1], [], []>} : vector<61x128xf32>, vector<128x122xf32>, vector<61x122xf32> -> vector<61x122xf32>
    %43 = arith.addf %36, %42 : vector<61x122xf32>
    %c2_44 = arith.constant 2 : index
    %c0_45 = arith.constant 0 : index
    %c0_46 = arith.constant 0 : index
    %44 = vector.load %arg5[%c2_44, %c0_45, %c0_46] : memref<3x61x31xf32, #tpu.memory_space<vmem>>, vector<1x61x31xf32>
    %45 = vector.shape_cast %44 : vector<1x61x31xf32> to vector<61x31xf32>
    %cst_47 = arith.constant dense<0.000000e+00> : vector<61x128xf32>
    %46 = tpu.matmul %45, %28, %cst_47 {dimension_numbers = #tpu.dot_dimension_numbers<[1], [0], [0], [1], [0, 0, 1, 1], [], []>} : vector<61x31xf32>, vector<31x128xf32>, vector<61x128xf32> -> vector<61x128xf32>
    %c2_48 = arith.constant 2 : index
    %c0_49 = arith.constant 0 : index
    %c0_50 = arith.constant 0 : index
    %47 = vector.load %arg6[%c2_48, %c0_49, %c0_50] : memref<3x128x122xf32, #tpu.memory_space<vmem>>, vector<1x128x122xf32>
    %48 = vector.shape_cast %47 : vector<1x128x122xf32> to vector<128x122xf32>
    %cst_51 = arith.constant dense<0.000000e+00> : vector<61x122xf32>
    %49 = tpu.matmul %46, %48, %cst_51 {dimension_numbers = #tpu.dot_dimension_numbers<[1], [0], [0], [1], [0, 0, 1, 1], [], []>} : vector<61x128xf32>, vector<128x122xf32>, vector<61x122xf32> -> vector<61x122xf32>
    %50 = arith.addf %43, %49 : vector<61x122xf32>
    %c0_52 = arith.constant 0 : index
    %c0_53 = arith.constant 0 : index
    %51 = vector.load %arg7[%c0_52, %c0_53] : memref<1x122xf32, #tpu.memory_space<vmem>>, vector<1x122xf32>
    %52 = vector.broadcast %51 : vector<1x122xf32> to vector<61x122xf32>
    %53 = arith.addf %50, %52 : vector<61x122xf32>
    %54 = vector.extract_strided_slice %53 {offsets = [0, 0], sizes = [61, 61], strides = [1, 1]} : vector<61x122xf32> to vector<61x61xf32>
    %c0_54 = arith.constant 0 : index
    %c0_55 = arith.constant 0 : index
    %c0_56 = arith.constant 0 : index
    %c0_57 = arith.constant 0 : index
    %55 = vector.load %arg8[%c0_54, %c0_55, %c0_56, %c0_57] : memref<1x2x61x61xf32, #tpu.memory_space<vmem>>, vector<1x1x61x61xf32>
    %56 = vector.shape_cast %55 : vector<1x1x61x61xf32> to vector<61x61xf32>
    %57 = vector.shape_cast %54 : vector<61x61xf32> to vector<1x1x61x61xf32>
    tpu.vector_store %arg8[%c0_54, %c0_55, %c0_56, %c0_57], %57 {strides = array<i32>} : memref<1x2x61x61xf32, #tpu.memory_space<vmem>>, vector<1x1x61x61xf32>,
    %58 = vector.extract_strided_slice %53 {offsets = [0, 61], sizes = [61, 61], strides = [1, 1]} : vector<61x122xf32> to vector<61x61xf32>
    %c0_58 = arith.constant 0 : index
    %c1_59 = arith.constant 1 : index
    %c0_60 = arith.constant 0 : index
    %c0_61 = arith.constant 0 : index
    %59 = vector.load %arg8[%c0_58, %c1_59, %c0_60, %c0_61] : memref<1x2x61x61xf32, #tpu.memory_space<vmem>>, vector<1x1x61x61xf32>
    %60 = vector.shape_cast %59 : vector<1x1x61x61xf32> to vector<61x61xf32>
    %61 = vector.shape_cast %58 : vector<61x61xf32> to vector<1x1x61x61xf32>
    tpu.vector_store %arg8[%c0_58, %c1_59, %c0_60, %c0_61], %61 {strides = array<i32>} : memref<1x2x61x61xf32, #tpu.memory_space<vmem>>, vector<1x1x61x61xf32>,
    return
  }
  func.func @transform_0(%arg0: i32) -> (i32, i32, i32) {
    %c0_i32 = arith.constant 0 : i32
    %c0_i32_0 = arith.constant 0 : i32
    %c0_i32_1 = arith.constant 0 : i32
    return %arg0, %c0_i32, %c0_i32_0 : i32, i32, i32
  }
  func.func @transform_1(%arg0: i32) -> (i32, i32, i32) {
    %c0_i32 = arith.constant 0 : i32
    %c0_i32_0 = arith.constant 0 : i32
    %c0_i32_1 = arith.constant 0 : i32
    %c0_i32_2 = arith.constant 0 : i32
    return %c0_i32, %c0_i32_0, %c0_i32_1 : i32, i32, i32
  }
  func.func @transform_2(%arg0: i32) -> (i32, i32, i32) {
    %c0_i32 = arith.constant 0 : i32
    %c0_i32_0 = arith.constant 0 : i32
    %c0_i32_1 = arith.constant 0 : i32
    %c0_i32_2 = arith.constant 0 : i32
    return %c0_i32, %c0_i32_0, %c0_i32_1 : i32, i32, i32
  }
  func.func @transform_3(%arg0: i32) -> (i32, i32) {
    %c0_i32 = arith.constant 0 : i32
    %c0_i32_0 = arith.constant 0 : i32
    %c0_i32_1 = arith.constant 0 : i32
    return %c0_i32, %c0_i32_0 : i32, i32
  }
  func.func @transform_4(%arg0: i32) -> (i32, i32, i32) {
    %c0_i32 = arith.constant 0 : i32
    %c0_i32_0 = arith.constant 0 : i32
    %c0_i32_1 = arith.constant 0 : i32
    %c0_i32_2 = arith.constant 0 : i32
    return %c0_i32, %c0_i32_0, %c0_i32_1 : i32, i32, i32
  }
  func.func @transform_5(%arg0: i32) -> (i32, i32, i32) {
    %c0_i32 = arith.constant 0 : i32
    %c0_i32_0 = arith.constant 0 : i32
    %c0_i32_1 = arith.constant 0 : i32
    %c0_i32_2 = arith.constant 0 : i32
    return %c0_i32, %c0_i32_0, %c0_i32_1 : i32, i32, i32
  }
  func.func @transform_6(%arg0: i32) -> (i32, i32) {
    %c0_i32 = arith.constant 0 : i32
    %c0_i32_0 = arith.constant 0 : i32
    %c0_i32_1 = arith.constant 0 : i32
    return %c0_i32, %c0_i32_0 : i32, i32
  }
  func.func @transform_7(%arg0: i32) -> (i32, i32, i32, i32) {
    %c0_i32 = arith.constant 0 : i32
    %c0_i32_0 = arith.constant 0 : i32
    %c0_i32_1 = arith.constant 0 : i32
    %c0_i32_2 = arith.constant 0 : i32
    return %arg0, %c0_i32, %c0_i32_0, %c0_i32_1 : i32, i32, i32, i32
  }
}

</mosaic_0001>

<llo_original>
// kernel: decoder_forward.1
$region0: #{decoder_forward.1}
  #allocation0 [shape = 'u32[]', space=smem, size = 0x4, offset = 0x4, fixed_abs, tag = 'smem constant byte address 0x4 - core index']
  #allocation1 [shape = 'u32[144,128]{1,0:T(1,128)}', space=vmem, size = 0x12000, scoped, tag = 'internal scratch']
  %s0 = inlined_call_operand.vmem [shape: f32[2,16,128], index: 0, kind: input, shape index: {}]
  %s1 = inlined_call_operand.vmem [shape: f32[3,31,16], index: 1, kind: input, shape index: {}]
  %s2 = inlined_call_operand.vmem [shape: f32[3,128,128], index: 2, kind: input, shape index: {}]
  %s3 = inlined_call_operand.vmem [shape: f32[1,128], index: 3, kind: input, shape index: {}]
  %s4 = inlined_call_operand.vmem [shape: f32[3,61,31], index: 4, kind: input, shape index: {}]
  %s5 = inlined_call_operand.vmem [shape: f32[3,128,122], index: 5, kind: input, shape index: {}]
  %s6 = inlined_call_operand.vmem [shape: f32[1,122], index: 6, kind: input, shape index: {}]
  %s7 = inlined_call_operand.vmem [shape: f32[2,2,61,61], index: 7, kind: output, shape index: {}]
  %s8 = sld [smem:[#allocation0]]
  $region61: #{decoder_forward.1} parent=0
    _
  %s10 = ssub.s32 1, %s8
  %s11 = scalar_select 0, %s10, %s8
  loop: start=0, step=1, limit=4
  $region2: #{decoder_forward.1} parent=0 // loop_pre_header
    _
  $region3: #{decoder_forward.1} parent=0 // loop_header
    %s13 = sphi 0, %s17
    %p14 = scmp.ge.s32.totalorder %s13, 4
    %s23 = sphi 0, %s25
    %s26 = sphi 0, %s23
    %s27 = sphi 0, %s26
    %s43 = sphi 0, %s27
    %s47 = sphi 0, %s47
    %s49 = sphi 0, %s47
    %s50 = sphi 0, %s49
    %s64 = sphi 0, %s50
    %s68 = sphi 0, %s68
    %s70 = sphi 0, %s68
    %s71 = sphi 0, %s70
    %s85 = sphi 0, %s71
    %s89 = sphi 0, %s89
    %s91 = sphi 0, %s89
    %s92 = sphi 0, %s91
    %s106 = sphi 0, %s92
    %s110 = sphi 0, %s110
    %s112 = sphi 0, %s110
    %s113 = sphi 0, %s112
    %s127 = sphi 0, %s113
    %s131 = sphi 0, %s131
    %s133 = sphi 0, %s131
    %s134 = sphi 0, %s133
    %s148 = sphi 0, %s134
    %s152 = sphi 0, %s152
    %s154 = sphi 0, %s152
    %s155 = sphi 0, %s154
    %s169 = sphi 0, %s155
    %s175 = sphi 0, %s177
    %s178 = sphi 0, %s175
    %s179 = sphi 0, %s178
    %s195 = sphi 0, %s179
  $region4: #{decoder_forward.1} parent=0 // loop_header_branch
    %16 = sbr.rel (%p14) target = $region8
  $region5: #{decoder_forward.1} parent=0 // loop_body
    %s18 = ssub.s32 %s13, 1
    %s19 = ssub.s32 %s13, 2
    %s20 = sadd.s32 %s13, 1
    %s21 = ssub.s32 %s13, %s20
    %p22 = scmp.eq.s32.totalorder %s21, 0
    %s24 = sadd.s32 %s23, 1
    %s25 = scalar_select %p22, %s23, %s24
    %p28 = pneg %p22
    %p29 = scmp.eq.s32.totalorder %s13, 1
    %p30 = por %p28, %p29
    %p31 = scmp.ne.s32.totalorder %s23, %s26
    %p32 = scmp.eq.s32.totalorder %s13, 0
    %p33 = por %p31, %p32
    %p34 = scmp.ne.s32.totalorder %s23, %s26
    %p35 = scmp.eq.s32.totalorder %s18, 1
    %p36 = por %p34, %p35
    %p37 = scmp.ne.s32.totalorder %s26, %s27
    %p38 = scmp.eq.s32.totalorder %s18, 0
    %p39 = por %p37, %p38
    %p40 = scmp.ne.s32.totalorder %s26, %s27
    %p41 = scmp.eq.s32.totalorder %s19, 1
    %p42 = por %p40, %p41
    %p44 = scmp.ne.s32.totalorder %s27, %s43
    %p45 = scmp.eq.s32.totalorder %s19, 0
    %p46 = por %p44, %p45
    %s48 = sadd.s32 %s47, 1
    %p51 = scmp.eq.s32.totalorder %s13, 1
    %p52 = scmp.ne.s32.totalorder %s47, %s49
    %p53 = scmp.eq.s32.totalorder %s13, 0
    %p54 = por %p52, %p53
    %p55 = scmp.ne.s32.totalorder %s47, %s49
    %p56 = scmp.eq.s32.totalorder %s18, 1
    %p57 = por %p55, %p56
    %p58 = scmp.ne.s32.totalorder %s49, %s50
    %p59 = scmp.eq.s32.totalorder %s18, 0
    %p60 = por %p58, %p59
    %p61 = scmp.ne.s32.totalorder %s49, %s50
    %p62 = scmp.eq.s32.totalorder %s19, 1
    %p63 = por %p61, %p62
    %p65 = scmp.ne.s32.totalorder %s50, %s64
    %p66 = scmp.eq.s32.totalorder %s19, 0
    %p67 = por %p65, %p66
    %s69 = sadd.s32 %s68, 1
    %p72 = scmp.eq.s32.totalorder %s13, 1
    %p73 = scmp.ne.s32.totalorder %s68, %s70
    %p74 = scmp.eq.s32.totalorder %s13, 0
    %p75 = por %p73, %p74
    %p76 = scmp.ne.s32.totalorder %s68, %s70
    %p77 = scmp.eq.s32.totalorder %s18, 1
    %p78 = por %p76, %p77
    %p79 = scmp.ne.s32.totalorder %s70, %s71
    %p80 = scmp.eq.s32.totalorder %s18, 0
    %p81 = por %p79, %p80
    %p82 = scmp.ne.s32.totalorder %s70, %s71
    %p83 = scmp.eq.s32.totalorder %s19, 1
    %p84 = por %p82, %p83
    %p86 = scmp.ne.s32.totalorder %s71, %s85
    %p87 = scmp.eq.s32.totalorder %s19, 0
    %p88 = por %p86, %p87
    %s90 = sadd.s32 %s89, 1
    %p93 = scmp.eq.s32.totalorder %s13, 1
    %p94 = scmp.ne.s32.totalorder %s89, %s91
    %p95 = scmp.eq.s32.totalorder %s13, 0
    %p96 = por %p94, %p95
    %p97 = scmp.ne.s32.totalorder %s89, %s91
    %p98 = scmp.eq.s32.totalorder %s18, 1
    %p99 = por %p97, %p98
    %p100 = scmp.ne.s32.totalorder %s91, %s92
    %p101 = scmp.eq.s32.totalorder %s18, 0
    %p102 = por %p100, %p101
    %p103 = scmp.ne.s32.totalorder %s91, %s92
    %p104 = scmp.eq.s32.totalorder %s19, 1
    %p105 = por %p103, %p104
    %p107 = scmp.ne.s32.totalorder %s92, %s106
    %p108 = scmp.eq.s32.totalorder %s19, 0
    %p109 = por %p107, %p108
    %s111 = sadd.s32 %s110, 1
    %p114 = scmp.eq.s32.totalorder %s13, 1
    %p115 = scmp.ne.s32.totalorder %s110, %s112
    %p116 = scmp.eq.s32.totalorder %s13, 0
    %p117 = por %p115, %p116
    %p118 = scmp.ne.s32.totalorder %s110, %s112
    %p119 = scmp.eq.s32.totalorder %s18, 1
    %p120 = por %p118, %p119
    %p121 = scmp.ne.s32.totalorder %s112, %s113
    %p122 = scmp.eq.s32.totalorder %s18, 0
    %p123 = por %p121, %p122
    %p124 = scmp.ne.s32.totalorder %s112, %s113
    %p125 = scmp.eq.s32.totalorder %s19, 1
    %p126 = por %p124, %p125
    %p128 = scmp.ne.s32.totalorder %s113, %s127
    %p129 = scmp.eq.s32.totalorder %s19, 0
    %p130 = por %p128, %p129
    %s132 = sadd.s32 %s131, 1
    %p135 = scmp.eq.s32.totalorder %s13, 1
    %p136 = scmp.ne.s32.totalorder %s131, %s133
    %p137 = scmp.eq.s32.totalorder %s13, 0
    %p138 = por %p136, %p137
    %p139 = scmp.ne.s32.totalorder %s131, %s133
    %p140 = scmp.eq.s32.totalorder %s18, 1
    %p141 = por %p139, %p140
    %p142 = scmp.ne.s32.totalorder %s133, %s134
    %p143 = scmp.eq.s32.totalorder %s18, 0
    %p144 = por %p142, %p143
    %p145 = scmp.ne.s32.totalorder %s133, %s134
    %p146 = scmp.eq.s32.totalorder %s19, 1
    %p147 = por %p145, %p146
    %p149 = scmp.ne.s32.totalorder %s134, %s148
    %p150 = scmp.eq.s32.totalorder %s19, 0
    %p151 = por %p149, %p150
    %s153 = sadd.s32 %s152, 1
    %p156 = scmp.eq.s32.totalorder %s13, 1
    %p157 = scmp.ne.s32.totalorder %s152, %s154
    %p158 = scmp.eq.s32.totalorder %s13, 0
    %p159 = por %p157, %p158
    %p160 = scmp.ne.s32.totalorder %s152, %s154
    %p161 = scmp.eq.s32.totalorder %s18, 1
    %p162 = por %p160, %p161
    %p163 = scmp.ne.s32.totalorder %s154, %s155
    %p164 = scmp.eq.s32.totalorder %s18, 0
    %p165 = por %p163, %p164
    %p166 = scmp.ne.s32.totalorder %s154, %s155
    %p167 = scmp.eq.s32.totalorder %s19, 1
    %p168 = por %p166, %p167
    %p170 = scmp.ne.s32.totalorder %s155, %s169
    %p171 = scmp.eq.s32.totalorder %s19, 0
    %p172 = por %p170, %p171
    %s173 = ssub.s32 %s13, %s20
    %p174 = scmp.eq.s32.totalorder %s173, 0
    %s176 = sadd.s32 %s175, 1
    %s177 = scalar_select %p174, %s175, %s176
    %p180 = pneg %p174
    %p181 = scmp.eq.s32.totalorder %s13, 1
    %p182 = por %p180, %p181
    %p183 = scmp.ne.s32.totalorder %s175, %s178
    %p184 = scmp.eq.s32.totalorder %s13, 0
    %p185 = por %p183, %p184
    %p186 = scmp.ne.s32.totalorder %s175, %s178
    %p187 = scmp.eq.s32.totalorder %s18, 1
    %p188 = por %p186, %p187
    %p189 = scmp.ne.s32.totalorder %s178, %s179
    %p190 = scmp.eq.s32.totalorder %s18, 0
    %p191 = por %p189, %p190
    %p192 = scmp.ne.s32.totalorder %s178, %s179
    %p193 = scmp.eq.s32.totalorder %s19, 1
    %p194 = por %p192, %p193
    %p196 = scmp.ne.s32.totalorder %s179, %s195
    %p197 = scmp.eq.s32.totalorder %s19, 0
    %p198 = por %p196, %p197
    %p199 = scmp.le.s32.totalorder 1, %s13
    %p200 = scmp.lt.s32.totalorder %s13, 3
    %p201 = pnand %p199, %p200
    %p202 = pneg %p201
    // Predicated region
    $region9: #{decoder_forward.1} parent=5 // pred_check
      _
    $region10: #{decoder_forward.1} parent=5 // pred_check_branch
      %204 = sbr.rel (%p201) target = $region12
    $region11: #{decoder_forward.1} parent=5 // pred_region
      %s205 = ssub.s32 %s13, 1
      // Predicated region
      $region13: #{decoder_forward.1} parent=11 // pred_check
        %p206 = pneg %p60
      $region14: #{decoder_forward.1} parent=11 // pred_check_branch
        %208 = sbr.rel (%p206) target = $region16
      $region15: #{decoder_forward.1} parent=11 // pred_region
        _
      $region16: #{decoder_forward.1} parent=11 // pred_fallthru
        _
      // Predicated region
      $region17: #{decoder_forward.1} parent=11 // pred_check
        %p209 = pneg %p81
      $region18: #{decoder_forward.1} parent=11 // pred_check_branch
        %211 = sbr.rel (%p209) target = $region20
      $region19: #{decoder_forward.1} parent=11 // pred_region
        _
      $region20: #{decoder_forward.1} parent=11 // pred_fallthru
        _
      // Predicated region
      $region21: #{decoder_forward.1} parent=11 // pred_check
        %p212 = pneg %p102
      $region22: #{decoder_forward.1} parent=11 // pred_check_branch
        %214 = sbr.rel (%p212) target = $region24
      $region23: #{decoder_forward.1} parent=11 // pred_region
        _
      $region24: #{decoder_forward.1} parent=11 // pred_fallthru
        _
      // Predicated region
      $region25: #{decoder_forward.1} parent=11 // pred_check
        %p215 = pneg %p123
      $region26: #{decoder_forward.1} parent=11 // pred_check_branch
        %217 = sbr.rel (%p215) target = $region28
      $region27: #{decoder_forward.1} parent=11 // pred_region
        _
      $region28: #{decoder_forward.1} parent=11 // pred_fallthru
        _
      // Predicated region
      $region29: #{decoder_forward.1} parent=11 // pred_check
        %p218 = pneg %p144
      $region30: #{decoder_forward.1} parent=11 // pred_check_branch
        %220 = sbr.rel (%p218) target = $region32
      $region31: #{decoder_forward.1} parent=11 // pred_region
        _
      $region32: #{decoder_forward.1} parent=11 // pred_fallthru
        _
      // Predicated region
      $region33: #{decoder_forward.1} parent=11 // pred_check
        %p221 = pneg %p165
      $region34: #{decoder_forward.1} parent=11 // pred_check_branch
        %223 = sbr.rel (%p221) target = $region36
      $region35: #{decoder_forward.1} parent=11 // pred_region
        _
      $region36: #{decoder_forward.1} parent=11 // pred_fallthru
        _
    $region12: #{decoder_forward.1} parent=5 // pred_fallthru
      _
    %p224 = scmp.lt.s32.totalorder %s13, 2
    // Predicated region
    $region37: #{decoder_forward.1} parent=5 // pred_check
      %p225 = pneg %p224
    $region38: #{decoder_forward.1} parent=5 // pred_check_branch
      %227 = sbr.rel (%p225) target = $region40
    $region39: #{decoder_forward.1} parent=5 // pred_region
      // Predicated region
      $region41: #{decoder_forward.1} parent=39 // pred_check
        %p228 = pneg %p33
      $region42: #{decoder_forward.1} parent=39 // pred_check_branch
        %230 = sbr.rel (%p228) target = $region44
      $region43: #{decoder_forward.1} parent=39 // pred_region
        %p231 = scmp.lt.s32.totalorder %s13, 1
        %s232 = scalar_select %p231, %s13, 1
        %s233 = smul.addr %s232, 2
        %s234 = smul.addr %s233, 8
        %s235 = scalar_lea.vmem %s0, %s234
      $region44: #{decoder_forward.1} parent=39 // pred_fallthru
        _
    $region40: #{decoder_forward.1} parent=5 // pred_fallthru
      _
    %p236 = scmp.le.s32.totalorder 1, %s13
    %p237 = scmp.lt.s32.totalorder %s13, 3
    %p238 = pnand %p236, %p237
    %p239 = pneg %p238
    // Predicated region
    $region45: #{decoder_forward.1} parent=5 // pred_check
      _
    $region46: #{decoder_forward.1} parent=5 // pred_check_branch
      %241 = sbr.rel (%p238) target = $region48
    $region47: #{decoder_forward.1} parent=5 // pred_region
      %s242 = ssub.s32 %s13, 1
      %p243 = scmp.lt.s32.totalorder %s18, 1
      %s244 = scalar_select %p243, %s18, 1
      %s245 = smul.addr %s244, 2
      %s246 = smul.addr %s245, 8
      %s247 = scalar_lea.vmem %s0, %s246
      %p248 = pneg %p39
      %p249 = pneg %p36
      %p250 = pneg %p60
      %p251 = pneg %p57
      %p252 = pneg %p81
      %p253 = pneg %p78
      %p254 = pneg %p102
      %p255 = pneg %p99
      %p256 = pneg %p123
      %p257 = pneg %p120
      %p258 = pneg %p144
      %p259 = pneg %p141
      %p260 = pneg %p165
      %p261 = pneg %p162
      %p262 = pneg %p191
      %p263 = pneg %p188
      %p264 = scmp.lt.s32.totalorder %s18, 1
      %s265 = scalar_select %p264, %s18, 1
      %s266 = smul.addr %s265, 16
      %s267 = smul.addr %s266, 8
      %s268 = scalar_lea.vmem %s7, %s267
      %p269 = scmp.lt.s32.totalorder %s18, 1
      %s270 = scalar_select %p269, %s18, 1
      %s271 = smul.addr %s270, 2
      %s272 = smul.addr %s271, 8
      %s273 = scalar_lea.vmem %s0, %s272
      %p274 = scmp.lt.s32.totalorder %s18, 1
      %s275 = scalar_select %p274, %s18, 1
      %s276 = smul.addr %s275, 16
      %s277 = smul.addr %s276, 8
      %s278 = scalar_lea.vmem %s7, %s277
      %v279 = vld [vmem:[%s273] sm:$0xff]
      %v280 = vld [vmem:[%s273 + $0x8] sm:$0xff]
      %v281 = vld [vmem:[%s1] sm:$0xff]
      %v282 = vld [vmem:[%s1 + $0x8] sm:$0xff]
      %v283 = vld [vmem:[%s1 + $0x10] sm:$0xff]
      %v284 = vld [vmem:[%s1 + $0x18] sm:$0x7f]
      %vm285 = vcmask 130048
      %v287 = vsel %vm285, %v281, 0
      %v290 = vsel %vm285, %v282, 0
      %v293 = vsel %vm285, %v283, 0
      %v296 = vsel %vm285, %v284, 0
      %298 = vmatprep.subr.mxu0 0.0
      %299 = vmatpush1.msra.mxu0 %v279
      %300 = vmatprep.subr.mxu0 0.0
      %301 = vmatpush1.msra.mxu0 %v280
      %302 = vmatprep.subr.mxu0 0.0
      %303 = vmatpush1.msra.mxu0 0.0
      %304 = vmatprep.subr.mxu0 0.0
      %305 = vmatpush1.msra.mxu0 0.0
      %306 = vmatprep.subr.mxu0 0.0
      %307 = vmatpush1.msra.mxu0 0.0
      %308 = vmatprep.subr.mxu0 0.0
      %309 = vmatpush1.msra.mxu0 0.0
      %310 = vmatprep.subr.mxu0 0.0
      %311 = vmatpush1.msra.mxu0 0.0
      %312 = vmatprep.subr.mxu0 0.0
      %313 = vmatpush1.msra.mxu0 0.0
      %314 = vmatprep.subr.mxu0 0.0
      %315 = vmatpush1.msra.mxu0 0.0
      %316 = vmatprep.subr.mxu0 0.0
      %317 = vmatpush1.msra.mxu0 0.0
      %318 = vmatprep.subr.mxu0 0.0
      %319 = vmatpush1.msra.mxu0 0.0
      %320 = vmatprep.subr.mxu0 0.0
      %321 = vmatpush1.msra.mxu0 0.0
      %322 = vmatprep.subr.mxu0 0.0
      %323 = vmatpush1.msra.mxu0 0.0
      %324 = vmatprep.subr.mxu0 0.0
      %325 = vmatpush1.msra.mxu0 0.0
      %326 = vmatprep.subr.mxu0 0.0
      %327 = vmatpush1.msra.mxu0 0.0
      %328 = vmatprep.subr.mxu0 0.0
      %329 = vmatpush1.msra.mxu0 0.0
      %330 = vmatprep.subr.mxu0 0.0
      %331 = vmatpush1.msra.mxu0 0.0
      %332 = vmatprep.subr.mxu0 0.0
      %333 = vmatpush1.msra.mxu0 0.0
      %334 = vmatprep.subr.mxu0 0.0
      %335 = vmatpush1.msra.mxu0 0.0
      %336 = vmatprep.subr.mxu0 0.0
      %337 = vmatpush1.msra.mxu0 0.0
      %338 = vmatprep.subr.mxu0 0.0
      %339 = vmatpush1.msra.mxu0 0.0
      %340 = vmatprep.subr.mxu0 0.0
      %341 = vmatpush1.msra.mxu0 0.0
      %342 = vmatprep.subr.mxu0 0.0
      %343 = vmatpush1.msra.mxu0 0.0
      %344 = vmatprep.subr.mxu0 0.0
      %345 = vmatpush1.msra.mxu0 0.0
      %346 = vmatprep.subr.mxu0 0.0
      %347 = vmatpush1.msra.mxu0 0.0
      %348 = vmatprep.subr.mxu0 0.0
      %349 = vmatpush1.msra.mxu0 0.0
      %350 = vmatprep.subr.mxu0 0.0
      %351 = vmatpush1.msra.mxu0 0.0
      %352 = vmatprep.subr.mxu0 0.0
      %353 = vmatpush1.msra.mxu0 0.0
      %354 = vmatprep.subr.mxu0 0.0
      %355 = vmatpush1.msra.mxu0 0.0
      %356 = vmatprep.subr.mxu0 0.0
      %357 = vmatpush1.msra.mxu0 0.0
      %358 = vmatprep.subr.mxu0 0.0
      %359 = vmatpush1.msra.mxu0 0.0
      %360 = vmatprep.subr.mxu0 0.0
      %361 = vmatpush1.msra.mxu0 0.0
      %362 = vmatprep.mubr.f32.mxu0 0.0
      %363 = vmatmul.mubr.f32.gmra.mrb[0].mxu0 %v287
      %v364 = vpop.f32.mrb[0].mxu0
      %v365 = vadd.f32 0.0, %v364
      %v366 = vpop.f32.mrb[0].mxu0
      %367 = vmatprep.mubr.f32.mxu0 0.0
      %368 = vmatmul.mubr.f32.gmra.mrb[0].mxu0 %v290
      %v369 = vpop.f32.mrb[0].mxu0
      %v370 = vadd.f32 0.0, %v369
      %v371 = vpop.f32.mrb[0].mxu0
      %372 = vmatprep.mubr.f32.mxu0 0.0
      %373 = vmatmul.mubr.f32.gmra.mrb[0].mxu0 %v293
      %v374 = vpop.f32.mrb[0].mxu0
      %v375 = vadd.f32 0.0, %v374
      %v376 = vpop.f32.mrb[0].mxu0
      %377 = vmatprep.mubr.f32.mxu0 0.0
      %378 = vmatmul.mubr.f32.gmra.mrb[0].mxu0 %v296
      %v379 = vpop.f32.mrb[0].mxu0
      %v380 = vadd.f32 0.0, %v379
      %v381 = vpop.f32.mrb[0].mxu0
      %382 = vdwg.mxu0
      %v383 = vld [vmem:[%s2] sm:$0xff]
      %v384 = vld [vmem:[%s2 + $0x8] sm:$0xff]
      %v385 = vld [vmem:[%s2 + $0x10] sm:$0xff]
      %v386 = vld [vmem:[%s2 + $0x18] sm:$0xff]
      %v387 = vld [vmem:[%s2 + $0x20] sm:$0xff]
      %v388 = vld [vmem:[%s2 + $0x28] sm:$0xff]
      %v389 = vld [vmem:[%s2 + $0x30] sm:$0xff]
      %v390 = vld [vmem:[%s2 + $0x38] sm:$0xff]
      %v391 = vld [vmem:[%s2 + $0x40] sm:$0xff]
      %v392 = vld [vmem:[%s2 + $0x48] sm:$0xff]
      %v393 = vld [vmem:[%s2 + $0x50] sm:$0xff]
      %v394 = vld [vmem:[%s2 + $0x58] sm:$0xff]
      %v395 = vld [vmem:[%s2 + $0x60] sm:$0xff]
      %v396 = vld [vmem:[%s2 + $0x68] sm:$0xff]
      %v397 = vld [vmem:[%s2 + $0x70] sm:$0xff]
      %v398 = vld [vmem:[%s2 + $0x78] sm:$0xff]
      %s399 = scalar_lea.vmem %s1, 32
      %v400 = vld [vmem:[%s399] sm:$0xff]
      %v401 = vld [vmem:[%s399 + $0x8] sm:$0xff]
      %v402 = vld [vmem:[%s399 + $0x10] sm:$0xff]
      %v403 = vld [vmem:[%s399 + $0x18] sm:$0x7f]
      %v405 = vsel %vm285, %v400, 0
      %v408 = vsel %vm285, %v401, 0
      %v411 = vsel %vm285, %v402, 0
      %v414 = vsel %vm285, %v403, 0
      %416 = vmatprep.subr.mxu0 0.0
      %417 = vmatpush1.msra.mxu0 %v279
      %418 = vmatprep.subr.mxu0 0.0
      %419 = vmatpush1.msra.mxu0 %v280
      %420 = vmatprep.subr.mxu0 0.0
      %421 = vmatpush1.msra.mxu0 0.0
      %422 = vmatprep.subr.mxu0 0.0
      %423 = vmatpush1.msra.mxu0 0.0
      %424 = vmatprep.subr.mxu0 0.0
      %425 = vmatpush1.msra.mxu0 0.0
      %426 = vmatprep.subr.mxu0 0.0
      %427 = vmatpush1.msra.mxu0 0.0
      %428 = vmatprep.subr.mxu0 0.0
      %429 = vmatpush1.msra.mxu0 0.0
      %430 = vmatprep.subr.mxu0 0.0
      %431 = vmatpush1.msra.mxu0 0.0
      %432 = vmatprep.subr.mxu0 0.0
      %433 = vmatpush1.msra.mxu0 0.0
      %434 = vmatprep.subr.mxu0 0.0
      %435 = vmatpush1.msra.mxu0 0.0
      %436 = vmatprep.subr.mxu0 0.0
      %437 = vmatpush1.msra.mxu0 0.0
      %438 = vmatprep.subr.mxu0 0.0
      %439 = vmatpush1.msra.mxu0 0.0
      %440 = vmatprep.subr.mxu0 0.0
      %441 = vmatpush1.msra.mxu0 0.0
      %442 = vmatprep.subr.mxu0 0.0
      %443 = vmatpush1.msra.mxu0 0.0
      %444 = vmatprep.subr.mxu0 0.0
      %445 = vmatpush1.msra.mxu0 0.0
      %446 = vmatprep.subr.mxu0 0.0
      %447 = vmatpush1.msra.mxu0 0.0
      %448 = vmatprep.subr.mxu0 0.0
      %449 = vmatpush1.msra.mxu0 0.0
      %450 = vmatprep.subr.mxu0 0.0
      %451 = vmatpush1.msra.mxu0 0.0
      %452 = vmatprep.subr.mxu0 0.0
      %453 = vmatpush1.msra.mxu0 0.0
      %454 = vmatprep.subr.mxu0 0.0
      %455 = vmatpush1.msra.mxu0 0.0
      %456 = vmatprep.subr.mxu0 0.0
      %457 = vmatpush1.msra.mxu0 0.0
      %458 = vmatprep.subr.mxu0 0.0
      %459 = vmatpush1.msra.mxu0 0.0
      %460 = vmatprep.subr.mxu0 0.0
      %461 = vmatpush1.msra.mxu0 0.0
      %462 = vmatprep.subr.mxu0 0.0
      %463 = vmatpush1.msra.mxu0 0.0
      %464 = vmatprep.subr.mxu0 0.0
      %465 = vmatpush1.msra.mxu0 0.0
      %466 = vmatprep.subr.mxu0 0.0
      %467 = vmatpush1.msra.mxu0 0.0
      %468 = vmatprep.subr.mxu0 0.0
      %469 = vmatpush1.msra.mxu0 0.0
      %470 = vmatprep.subr.mxu0 0.0
      %471 = vmatpush1.msra.mxu0 0.0
      %472 = vmatprep.subr.mxu0 0.0
      %473 = vmatpush1.msra.mxu0 0.0
      %474 = vmatprep.subr.mxu0 0.0
      %475 = vmatpush1.msra.mxu0 0.0
      %476 = vmatprep.subr.mxu0 0.0
      %477 = vmatpush1.msra.mxu0 0.0
      %478 = vmatprep.subr.mxu0 0.0
      %479 = vmatpush1.msra.mxu0 0.0
      %480 = vmatprep.mubr.f32.mxu0 0.0
      %481 = vmatmul.mubr.f32.gmra.mrb[0].mxu0 %v405
      %v482 = vpop.f32.mrb[0].mxu0
      %v483 = vadd.f32 0.0, %v482
      %v484 = vpop.f32.mrb[0].mxu0
      %485 = vmatprep.mubr.f32.mxu0 0.0
      %486 = vmatmul.mubr.f32.gmra.mrb[0].mxu0 %v408
      %v487 = vpop.f32.mrb[0].mxu0
      %v488 = vadd.f32 0.0, %v487
      %v489 = vpop.f32.mrb[0].mxu0
      %490 = vmatprep.mubr.f32.mxu0 0.0
      %491 = vmatmul.mubr.f32.gmra.mrb[0].mxu0 %v411
      %v492 = vpop.f32.mrb[0].mxu0
      %v493 = vadd.f32 0.0, %v492
      %v494 = vpop.f32.mrb[0].mxu0
      %495 = vmatprep.mubr.f32.mxu0 0.0
      %496 = vmatmul.mubr.f32.gmra.mrb[0].mxu0 %v414
      %v497 = vpop.f32.mrb[0].mxu0
      %v498 = vadd.f32 0.0, %v497
      %v499 = vpop.f32.mrb[0].mxu0
      %500 = vdwg.mxu0
      %s501 = scalar_lea.vmem %s2, 128
      %v502 = vld [vmem:[%s501] sm:$0xff]
      %v503 = vld [vmem:[%s501 + $0x8] sm:$0xff]
      %v504 = vld [vmem:[%s501 + $0x10] sm:$0xff]
      %v505 = vld [vmem:[%s501 + $0x18] sm:$0xff]
      %v506 = vld [vmem:[%s501 + $0x20] sm:$0xff]
      %v507 = vld [vmem:[%s501 + $0x28] sm:$0xff]
      %v508 = vld [vmem:[%s501 + $0x30] sm:$0xff]
      %v509 = vld [vmem:[%s501 + $0x38] sm:$0xff]
      %v510 = vld [vmem:[%s501 + $0x40] sm:$0xff]
      %v511 = vld [vmem:[%s501 + $0x48] sm:$0xff]
      %v512 = vld [vmem:[%s501 + $0x50] sm:$0xff]
      %v513 = vld [vmem:[%s501 + $0x58] sm:$0xff]
      %v514 = vld [vmem:[%s501 + $0x60] sm:$0xff]
      %v515 = vld [vmem:[%s501 + $0x68] sm:$0xff]
      %v516 = vld [vmem:[%s501 + $0x70] sm:$0xff]
      %v517 = vld [vmem:[%s501 + $0x78] sm:$0xff]
      %518 = vmatprep.subr.mxu0 0.0
      %519 = vmatpush1.msra.mxu0 %v502
      %520 = vmatprep.subr.mxu0 0.0
      %521 = vmatpush1.msra.mxu0 %v503
      %522 = vmatprep.subr.mxu0 0.0
      %523 = vmatpush1.msra.mxu0 %v504
      %524 = vmatprep.subr.mxu0 0.0
      %525 = vmatpush1.msra.mxu0 %v505
      %526 = vmatprep.subr.mxu0 0.0
      %527 = vmatpush1.msra.mxu0 %v506
      %528 = vmatprep.subr.mxu0 0.0
      %529 = vmatpush1.msra.mxu0 %v507
      %530 = vmatprep.subr.mxu0 0.0
      %531 = vmatpush1.msra.mxu0 %v508
      %532 = vmatprep.subr.mxu0 0.0
      %533 = vmatpush1.msra.mxu0 %v509
      %534 = vmatprep.subr.mxu0 0.0
      %535 = vmatpush1.msra.mxu0 %v510
      %536 = vmatprep.subr.mxu0 0.0
      %537 = vmatpush1.msra.mxu0 %v511
      %538 = vmatprep.subr.mxu0 0.0
      %539 = vmatpush1.msra.mxu0 %v512
      %540 = vmatprep.subr.mxu0 0.0
      %541 = vmatpush1.msra.mxu0 %v513
      %542 = vmatprep.subr.mxu0 0.0
      %543 = vmatpush1.msra.mxu0 %v514
      %544 = vmatprep.subr.mxu0 0.0
      %545 = vmatpush1.msra.mxu0 %v515
      %546 = vmatprep.subr.mxu0 0.0
      %547 = vmatpush1.msra.mxu0 %v516
      %548 = vmatprep.subr.mxu0 0.0
      %549 = vmatpush1.msra.mxu0 %v517
      %550 = vmatprep.subr.mxu0 0.0
      %551 = vmatpush1.msra.mxu0 0.0
      %552 = vmatprep.subr.mxu0 0.0
      %553 = vmatpush1.msra.mxu0 0.0
      %554 = vmatprep.subr.mxu0 0.0
      %555 = vmatpush1.msra.mxu0 0.0
      %556 = vmatprep.subr.mxu0 0.0
      %557 = vmatpush1.msra.mxu0 0.0
      %558 = vmatprep.subr.mxu0 0.0
      %559 = vmatpush1.msra.mxu0 0.0
      %560 = vmatprep.subr.mxu0 0.0
      %561 = vmatpush1.msra.mxu0 0.0
      %562 = vmatprep.subr.mxu0 0.0
      %563 = vmatpush1.msra.mxu0 0.0
      %564 = vmatprep.subr.mxu0 0.0
      %565 = vmatpush1.msra.mxu0 0.0
      %566 = vmatprep.subr.mxu0 0.0
      %567 = vmatpush1.msra.mxu0 0.0
      %568 = vmatprep.subr.mxu0 0.0
      %569 = vmatpush1.msra.mxu0 0.0
      %570 = vmatprep.subr.mxu0 0.0
      %571 = vmatpush1.msra.mxu0 0.0
      %572 = vmatprep.subr.mxu0 0.0
      %573 = vmatpush1.msra.mxu0 0.0
      %574 = vmatprep.subr.mxu0 0.0
      %575 = vmatpush1.msra.mxu0 0.0
      %576 = vmatprep.subr.mxu0 0.0
      %577 = vmatpush1.msra.mxu0 0.0
      %578 = vmatprep.subr.mxu0 0.0
      %579 = vmatpush1.msra.mxu0 0.0
      %580 = vmatprep.subr.mxu0 0.0
      %581 = vmatpush1.msra.mxu0 0.0
      %582 = vmatprep.mubr.f32.mxu0 0.0
      %583 = vmatmul.mubr.f32.gmra.mrb[0].mxu0 %v483
      %v584 = vpop.f32.mrb[0].mxu0
      %v585 = vadd.f32 0.0, %v584
      %v586 = vpop.f32.mrb[0].mxu0
      %587 = vmatprep.mubr.f32.mxu0 0.0
      %588 = vmatmul.mubr.f32.gmra.mrb[0].mxu0 %v488
      %v589 = vpop.f32.mrb[0].mxu0
      %v590 = vadd.f32 0.0, %v589
      %v591 = vpop.f32.mrb[0].mxu0
      %592 = vmatprep.mubr.f32.mxu0 0.0
      %593 = vmatmul.mubr.f32.gmra.mrb[0].mxu0 %v493
      %v594 = vpop.f32.mrb[0].mxu0
      %v595 = vadd.f32 0.0, %v594
      %v596 = vpop.f32.mrb[0].mxu0
      %597 = vmatprep.mubr.f32.mxu0 0.0
      %598 = vmatmul.mubr.f32.gmra.mrb[0].mxu0 %v498
      %v599 = vpop.f32.mrb[0].mxu0
      %v600 = vadd.f32 0.0, %v599
      %v601 = vpop.f32.mrb[0].mxu0
      %602 = vdwg.mxu0
      %603 = vmatprep.subr.mxu0 0.0
      %604 = vmatpush1.msra.mxu0 %v383
      %605 = vmatprep.subr.mxu0 0.0
      %606 = vmatpush1.msra.mxu0 %v384
      %607 = vmatprep.subr.mxu0 0.0
      %608 = vmatpush1.msra.mxu0 %v385
      %609 = vmatprep.subr.mxu0 0.0
      %610 = vmatpush1.msra.mxu0 %v386
      %611 = vmatprep.subr.mxu0 0.0
      %612 = vmatpush1.msra.mxu0 %v387
      %613 = vmatprep.subr.mxu0 0.0
      %614 = vmatpush1.msra.mxu0 %v388
      %615 = vmatprep.subr.mxu0 0.0
      %616 = vmatpush1.msra.mxu0 %v389
      %617 = vmatprep.subr.mxu0 0.0
      %618 = vmatpush1.msra.mxu0 %v390
      %619 = vmatprep.subr.mxu0 0.0
      %620 = vmatpush1.msra.mxu0 %v391
      %621 = vmatprep.subr.mxu0 0.0
      %622 = vmatpush1.msra.mxu0 %v392
      %623 = vmatprep.subr.mxu0 0.0
      %624 = vmatpush1.msra.mxu0 %v393
      %625 = vmatprep.subr.mxu0 0.0
      %626 = vmatpush1.msra.mxu0 %v394
      %627 = vmatprep.subr.mxu0 0.0
      %628 = vmatpush1.msra.mxu0 %v395
      %629 = vmatprep.subr.mxu0 0.0
      %630 = vmatpush1.msra.mxu0 %v396
      %631 = vmatprep.subr.mxu0 0.0
      %632 = vmatpush1.msra.mxu0 %v397
      %633 = vmatprep.subr.mxu0 0.0
      %634 = vmatpush1.msra.mxu0 %v398
      %635 = vmatprep.subr.mxu0 0.0
      %636 = vmatpush1.msra.mxu0 0.0
      %637 = vmatprep.subr.mxu0 0.0
      %638 = vmatpush1.msra.mxu0 0.0
      %639 = vmatprep.subr.mxu0 0.0
      %640 = vmatpush1.msra.mxu0 0.0
      %641 = vmatprep.subr.mxu0 0.0
      %642 = vmatpush1.msra.mxu0 0.0
      %643 = vmatprep.subr.mxu0 0.0
      %644 = vmatpush1.msra.mxu0 0.0
      %645 = vmatprep.subr.mxu0 0.0
      %646 = vmatpush1.msra.mxu0 0.0
      %647 = vmatprep.subr.mxu0 0.0
      %648 = vmatpush1.msra.mxu0 0.0
      %649 = vmatprep.subr.mxu0 0.0
      %650 = vmatpush1.msra.mxu0 0.0
      %651 = vmatprep.subr.mxu0 0.0
      %652 = vmatpush1.msra.mxu0 0.0
      %653 = vmatprep.subr.mxu0 0.0
      %654 = vmatpush1.msra.mxu0 0.0
      %655 = vmatprep.subr.mxu0 0.0
      %656 = vmatpush1.msra.mxu0 0.0
      %657 = vmatprep.subr.mxu0 0.0
      %658 = vmatpush1.msra.mxu0 0.0
      %659 = vmatprep.subr.mxu0 0.0
      %660 = vmatpush1.msra.mxu0 0.0
      %661 = vmatprep.subr.mxu0 0.0
      %662 = vmatpush1.msra.mxu0 0.0
      %663 = vmatprep.subr.mxu0 0.0
      %664 = vmatpush1.msra.mxu0 0.0
      %665 = vmatprep.subr.mxu0 0.0
      %666 = vmatpush1.msra.mxu0 0.0
      %667 = vmatprep.mubr.f32.mxu0 0.0
      %668 = vmatmul.mubr.f32.gmra.mrb[0].mxu0 %v365
      %v669 = vpop.f32.mrb[0].mxu0
      %v670 = vadd.f32 %v585, %v669
      %v671 = vpop.f32.mrb[0].mxu0
      %672 = vmatprep.mubr.f32.mxu0 0.0
      %673 = vmatmul.mubr.f32.gmra.mrb[0].mxu0 %v370
      %v674 = vpop.f32.mrb[0].mxu0
      %v675 = vadd.f32 %v590, %v674
      %v676 = vpop.f32.mrb[0].mxu0
      %677 = vmatprep.mubr.f32.mxu0 0.0
      %678 = vmatmul.mubr.f32.gmra.mrb[0].mxu0 %v375
      %v679 = vpop.f32.mrb[0].mxu0
      %v680 = vadd.f32 %v595, %v679
      %v681 = vpop.f32.mrb[0].mxu0
      %682 = vmatprep.mubr.f32.mxu0 0.0
      %683 = vmatmul.mubr.f32.gmra.mrb[0].mxu0 %v380
      %v684 = vpop.f32.mrb[0].mxu0
      %v685 = vadd.f32 %v600, %v684
      %v686 = vpop.f32.mrb[0].mxu0
      %687 = vdwg.mxu0
      %s688 = scalar_lea.vmem %s1, 64
      %v689 = vld [vmem:[%s688] sm:$0xff]
      %v690 = vld [vmem:[%s688 + $0x8] sm:$0xff]
      %v691 = vld [vmem:[%s688 + $0x10] sm:$0xff]
      %v692 = vld [vmem:[%s688 + $0x18] sm:$0x7f]
      %v694 = vsel %vm285, %v689, 0
      %v697 = vsel %vm285, %v690, 0
      %v700 = vsel %vm285, %v691, 0
      %v703 = vsel %vm285, %v692, 0
      %705 = vmatprep.subr.mxu0 0.0
      %706 = vmatpush1.msra.mxu0 %v279
      %707 = vmatprep.subr.mxu0 0.0
      %708 = vmatpush1.msra.mxu0 %v280
      %709 = vmatprep.subr.mxu0 0.0
      %710 = vmatpush1.msra.mxu0 0.0
      %711 = vmatprep.subr.mxu0 0.0
      %712 = vmatpush1.msra.mxu0 0.0
      %713 = vmatprep.subr.mxu0 0.0
      %714 = vmatpush1.msra.mxu0 0.0
      %715 = vmatprep.subr.mxu0 0.0
      %716 = vmatpush1.msra.mxu0 0.0
      %717 = vmatprep.subr.mxu0 0.0
      %718 = vmatpush1.msra.mxu0 0.0
      %719 = vmatprep.subr.mxu0 0.0
      %720 = vmatpush1.msra.mxu0 0.0
      %721 = vmatprep.subr.mxu0 0.0
      %722 = vmatpush1.msra.mxu0 0.0
      %723 = vmatprep.subr.mxu0 0.0
      %724 = vmatpush1.msra.mxu0 0.0
      %725 = vmatprep.subr.mxu0 0.0
      %726 = vmatpush1.msra.mxu0 0.0
      %727 = vmatprep.subr.mxu0 0.0
      %728 = vmatpush1.msra.mxu0 0.0
      %729 = vmatprep.subr.mxu0 0.0
      %730 = vmatpush1.msra.mxu0 0.0
      %731 = vmatprep.subr.mxu0 0.0
      %732 = vmatpush1.msra.mxu0 0.0
      %733 = vmatprep.subr.mxu0 0.0
      %734 = vmatpush1.msra.mxu0 0.0
      %735 = vmatprep.subr.mxu0 0.0
      %736 = vmatpush1.msra.mxu0 0.0
      %737 = vmatprep.subr.mxu0 0.0
      %738 = vmatpush1.msra.mxu0 0.0
      %739 = vmatprep.subr.mxu0 0.0
      %740 = vmatpush1.msra.mxu0 0.0
      %741 = vmatprep.subr.mxu0 0.0
      %742 = vmatpush1.msra.mxu0 0.0
      %743 = vmatprep.subr.mxu0 0.0
      %744 = vmatpush1.msra.mxu0 0.0
      %745 = vmatprep.subr.mxu0 0.0
      %746 = vmatpush1.msra.mxu0 0.0
      %747 = vmatprep.subr.mxu0 0.0
      %748 = vmatpush1.msra.mxu0 0.0
      %749 = vmatprep.subr.mxu0 0.0
      %750 = vmatpush1.msra.mxu0 0.0
      %751 = vmatprep.subr.mxu0 0.0
      %752 = vmatpush1.msra.mxu0 0.0
      %753 = vmatprep.subr.mxu0 0.0
      %754 = vmatpush1.msra.mxu0 0.0
      %755 = vmatprep.subr.mxu0 0.0
      %756 = vmatpush1.msra.mxu0 0.0
      %757 = vmatprep.subr.mxu0 0.0
      %758 = vmatpush1.msra.mxu0 0.0
      %759 = vmatprep.subr.mxu0 0.0
      %760 = vmatpush1.msra.mxu0 0.0
      %761 = vmatprep.subr.mxu0 0.0
      %762 = vmatpush1.msra.mxu0 0.0
      %763 = vmatprep.subr.mxu0 0.0
      %764 = vmatpush1.msra.mxu0 0.0
      %765 = vmatprep.subr.mxu0 0.0
      %766 = vmatpush1.msra.mxu0 0.0
      %767 = vmatprep.subr.mxu0 0.0
      %768 = vmatpush1.msra.mxu0 0.0
      %769 = vmatprep.mubr.f32.mxu0 0.0
      %770 = vmatmul.mubr.f32.gmra.mrb[0].mxu0 %v694
      %v771 = vpop.f32.mrb[0].mxu0
      %v772 = vadd.f32 0.0, %v771
      %v773 = vpop.f32.mrb[0].mxu0
      %774 = vmatprep.mubr.f32.mxu0 0.0
      %775 = vmatmul.mubr.f32.gmra.mrb[0].mxu0 %v697
      %v776 = vpop.f32.mrb[0].mxu0
      %v777 = vadd.f32 0.0, %v776
      %v778 = vpop.f32.mrb[0].mxu0
      %779 = vmatprep.mubr.f32.mxu0 0.0
      %780 = vmatmul.mubr.f32.gmra.mrb[0].mxu0 %v700
      %v781 = vpop.f32.mrb[0].mxu0
      %v782 = vadd.f32 0.0, %v781
      %v783 = vpop.f32.mrb[0].mxu0
      %784 = vmatprep.mubr.f32.mxu0 0.0
      %785 = vmatmul.mubr.f32.gmra.mrb[0].mxu0 %v703
      %v786 = vpop.f32.mrb[0].mxu0
      %v787 = vadd.f32 0.0, %v786
      %v788 = vpop.f32.mrb[0].mxu0
      %789 = vdwg.mxu0
      %s790 = scalar_lea.vmem %s2, 256
      %v791 = vld [vmem:[%s790] sm:$0xff]
      %v792 = vld [vmem:[%s790 + $0x8] sm:$0xff]
      %v793 = vld [vmem:[%s790 + $0x10] sm:$0xff]
      %v794 = vld [vmem:[%s790 + $0x18] sm:$0xff]
      %v795 = vld [vmem:[%s790 + $0x20] sm:$0xff]
      %v796 = vld [vmem:[%s790 + $0x28] sm:$0xff]
      %v797 = vld [vmem:[%s790 + $0x30] sm:$0xff]
      %v798 = vld [vmem:[%s790 + $0x38] sm:$0xff]
      %v799 = vld [vmem:[%s790 + $0x40] sm:$0xff]
      %v800 = vld [vmem:[%s790 + $0x48] sm:$0xff]
      %v801 = vld [vmem:[%s790 + $0x50] sm:$0xff]
      %v802 = vld [vmem:[%s790 + $0x58] sm:$0xff]
      %v803 = vld [vmem:[%s790 + $0x60] sm:$0xff]
      %v804 = vld [vmem:[%s790 + $0x68] sm:$0xff]
      %v805 = vld [vmem:[%s790 + $0x70] sm:$0xff]
      %v806 = vld [vmem:[%s790 + $0x78] sm:$0xff]
      %807 = vmatprep.subr.mxu0 0.0
      %808 = vmatpush1.msra.mxu0 %v791
      %809 = vmatprep.subr.mxu0 0.0
      %810 = vmatpush1.msra.mxu0 %v792
      %811 = vmatprep.subr.mxu0 0.0
      %812 = vmatpush1.msra.mxu0 %v793
      %813 = vmatprep.subr.mxu0 0.0
      %814 = vmatpush1.msra.mxu0 %v794
      %815 = vmatprep.subr.mxu0 0.0
      %816 = vmatpush1.msra.mxu0 %v795
      %817 = vmatprep.subr.mxu0 0.0
      %818 = vmatpush1.msra.mxu0 %v796
      %819 = vmatprep.subr.mxu0 0.0
      %820 = vmatpush1.msra.mxu0 %v797
      %821 = vmatprep.subr.mxu0 0.0
      %822 = vmatpush1.msra.mxu0 %v798
      %823 = vmatprep.subr.mxu0 0.0
      %824 = vmatpush1.msra.mxu0 %v799
      %825 = vmatprep.subr.mxu0 0.0
      %826 = vmatpush1.msra.mxu0 %v800
      %827 = vmatprep.subr.mxu0 0.0
      %828 = vmatpush1.msra.mxu0 %v801
      %829 = vmatprep.subr.mxu0 0.0
      %830 = vmatpush1.msra.mxu0 %v802
      %831 = vmatprep.subr.mxu0 0.0
      %832 = vmatpush1.msra.mxu0 %v803
      %833 = vmatprep.subr.mxu0 0.0
      %834 = vmatpush1.msra.mxu0 %v804
      %835 = vmatprep.subr.mxu0 0.0
      %836 = vmatpush1.msra.mxu0 %v805
      %837 = vmatprep.subr.mxu0 0.0
      %838 = vmatpush1.msra.mxu0 %v806
      %839 = vmatprep.subr.mxu0 0.0
      %840 = vmatpush1.msra.mxu0 0.0
      %841 = vmatprep.subr.mxu0 0.0
      %842 = vmatpush1.msra.mxu0 0.0
      %843 = vmatprep.subr.mxu0 0.0
      %844 = vmatpush1.msra.mxu0 0.0
      %845 = vmatprep.subr.mxu0 0.0
      %846 = vmatpush1.msra.mxu0 0.0
      %847 = vmatprep.subr.mxu0 0.0
      %848 = vmatpush1.msra.mxu0 0.0
      %849 = vmatprep.subr.mxu0 0.0
      %850 = vmatpush1.msra.mxu0 0.0
      %851 = vmatprep.subr.mxu0 0.0
      %852 = vmatpush1.msra.mxu0 0.0
      %853 = vmatprep.subr.mxu0 0.0
      %854 = vmatpush1.msra.mxu0 0.0
      %855 = vmatprep.subr.mxu0 0.0
      %856 = vmatpush1.msra.mxu0 0.0
      %857 = vmatprep.subr.mxu0 0.0
      %858 = vmatpush1.msra.mxu0 0.0
      %859 = vmatprep.subr.mxu0 0.0
      %860 = vmatpush1.msra.mxu0 0.0
      %861 = vmatprep.subr.mxu0 0.0
      %862 = vmatpush1.msra.mxu0 0.0
      %863 = vmatprep.subr.mxu0 0.0
      %864 = vmatpush1.msra.mxu0 0.0
      %865 = vmatprep.subr.mxu0 0.0
      %866 = vmatpush1.msra.mxu0 0.0
      %867 = vmatprep.subr.mxu0 0.0
      %868 = vmatpush1.msra.mxu0 0.0
      %869 = vmatprep.subr.mxu0 0.0
      %870 = vmatpush1.msra.mxu0 0.0
      %871 = vmatprep.mubr.f32.mxu0 0.0
      %872 = vmatmul.mubr.f32.gmra.mrb[0].mxu0 %v772
      %v873 = vpop.f32.mrb[0].mxu0
      %v874 = vadd.f32 0.0, %v873
      %v875 = vpop.f32.mrb[0].mxu0
      %876 = vmatprep.mubr.f32.mxu0 0.0
      %877 = vmatmul.mubr.f32.gmra.mrb[0].mxu0 %v777
      %v878 = vpop.f32.mrb[0].mxu0
      %v879 = vadd.f32 0.0, %v878
      %v880 = vpop.f32.mrb[0].mxu0
      %881 = vmatprep.mubr.f32.mxu0 0.0
      %882 = vmatmul.mubr.f32.gmra.mrb[0].mxu0 %v782
      %v883 = vpop.f32.mrb[0].mxu0
      %v884 = vadd.f32 0.0, %v883
      %v885 = vpop.f32.mrb[0].mxu0
      %886 = vmatprep.mubr.f32.mxu0 0.0
      %887 = vmatmul.mubr.f32.gmra.mrb[0].mxu0 %v787
      %v888 = vpop.f32.mrb[0].mxu0
      %v889 = vadd.f32 0.0, %v888
      %v890 = vpop.f32.mrb[0].mxu0
      %891 = vdwg.mxu0
      %v892 = vadd.f32 %v670, %v874
      %v893 = vadd.f32 %v675, %v879
      %v894 = vadd.f32 %v680, %v884
      %v895 = vadd.f32 %v685, %v889
      %v896 = vld [vmem:[%s3] sm:$0x1]
      %v898 = vlaneseq
      %v899 = vshrl.u32 %v898, 7
      %v900 = vsub.s32 0, %v899
      %v901 = vrot.slane %v896, %v900
      %v903 = vadd.f32 %v892, %v901
      %v904 = vadd.f32 %v893, %v901
      %v905 = vadd.f32 %v894, %v901
      %v906 = vadd.f32 %v895, %v901
      %v907 = vmax.f32 %v903, 0.0
      %v908 = vmax.f32 %v904, 0.0
      %v909 = vmax.f32 %v905, 0.0
      %v910 = vmax.f32 %v906, 0.0
      %v911 = vld [vmem:[%s4] sm:$0xff]
      %v912 = vld [vmem:[%s4 + $0x8] sm:$0xff]
      %v913 = vld [vmem:[%s4 + $0x10] sm:$0xff]
      %v914 = vld [vmem:[%s4 + $0x18] sm:$0xff]
      %v915 = vld [vmem:[%s4 + $0x20] sm:$0xff]
      %v916 = vld [vmem:[%s4 + $0x28] sm:$0xff]
      %v917 = vld [vmem:[%s4 + $0x30] sm:$0xff]
      %v918 = vld [vmem:[%s4 + $0x38] sm:$0x1f]
      %vm919 = vcmask 252928
      %v921 = vsel %vm919, %v911, 0
      %v924 = vsel %vm919, %v912, 0
      %v927 = vsel %vm919, %v913, 0
      %v930 = vsel %vm919, %v914, 0
      %v933 = vsel %vm919, %v915, 0
      %v936 = vsel %vm919, %v916, 0
      %v939 = vsel %vm919, %v917, 0
      %v942 = vsel %vm919, %v918, 0
      %vm944 = vcmask 1046528
      %v946 = vsel %vm944, %v910, 0
      %948 = vmatprep.subr.mxu0 0.0
      %949 = vmatpush1.msra.mxu0 %v907
      %950 = vmatprep.subr.mxu0 0.0
      %951 = vmatpush1.msra.mxu0 %v908
      %952 = vmatprep.subr.mxu0 0.0
      %953 = vmatpush1.msra.mxu0 %v909
      %954 = vmatprep.subr.mxu0 0.0
      %955 = vmatpush1.msra.mxu0 %v946
      %956 = vmatprep.subr.mxu0 0.0
      %957 = vmatpush1.msra.mxu0 0.0
      %958 = vmatprep.subr.mxu0 0.0
      %959 = vmatpush1.msra.mxu0 0.0
      %960 = vmatprep.subr.mxu0 0.0
      %961 = vmatpush1.msra.mxu0 0.0
      %962 = vmatprep.subr.mxu0 0.0
      %963 = vmatpush1.msra.mxu0 0.0
      %964 = vmatprep.subr.mxu0 0.0
      %965 = vmatpush1.msra.mxu0 0.0
      %966 = vmatprep.subr.mxu0 0.0
      %967 = vmatpush1.msra.mxu0 0.0
      %968 = vmatprep.subr.mxu0 0.0
      %969 = vmatpush1.msra.mxu0 0.0
      %970 = vmatprep.subr.mxu0 0.0
      %971 = vmatpush1.msra.mxu0 0.0
      %972 = vmatprep.subr.mxu0 0.0
      %973 = vmatpush1.msra.mxu0 0.0
      %974 = vmatprep.subr.mxu0 0.0
      %975 = vmatpush1.msra.mxu0 0.0
      %976 = vmatprep.subr.mxu0 0.0
      %977 = vmatpush1.msra.mxu0 0.0
      %978 = vmatprep.subr.mxu0 0.0
      %979 = vmatpush1.msra.mxu0 0.0
      %980 = vmatprep.subr.mxu0 0.0
      %981 = vmatpush1.msra.mxu0 0.0
      %982 = vmatprep.subr.mxu0 0.0
      %983 = vmatpush1.msra.mxu0 0.0
      %984 = vmatprep.subr.mxu0 0.0
      %985 = vmatpush1.msra.mxu0 0.0
      %986 = vmatprep.subr.mxu0 0.0
      %987 = vmatpush1.msra.mxu0 0.0
      %988 = vmatprep.subr.mxu0 0.0
      %989 = vmatpush1.msra.mxu0 0.0
      %990 = vmatprep.subr.mxu0 0.0
      %991 = vmatpush1.msra.mxu0 0.0
      %992 = vmatprep.subr.mxu0 0.0
      %993 = vmatpush1.msra.mxu0 0.0
      %994 = vmatprep.subr.mxu0 0.0
      %995 = vmatpush1.msra.mxu0 0.0
      %996 = vmatprep.subr.mxu0 0.0
      %997 = vmatpush1.msra.mxu0 0.0
      %998 = vmatprep.subr.mxu0 0.0
      %999 = vmatpush1.msra.mxu0 0.0
      %1000 = vmatprep.subr.mxu0 0.0
      %1001 = vmatpush1.msra.mxu0 0.0
      %1002 = vmatprep.subr.mxu0 0.0
      %1003 = vmatpush1.msra.mxu0 0.0
      %1004 = vmatprep.subr.mxu0 0.0
      %1005 = vmatpush1.msra.mxu0 0.0
      %1006 = vmatprep.subr.mxu0 0.0
      %1007 = vmatpush1.msra.mxu0 0.0
      %1008 = vmatprep.subr.mxu0 0.0
      %1009 = vmatpush1.msra.mxu0 0.0
      %1010 = vmatprep.subr.mxu0 0.0
      %1011 = vmatpush1.msra.mxu0 0.0
      %1012 = vmatprep.mubr.f32.mxu0 0.0
      %1013 = vmatmul.mubr.f32.gmra.mrb[0].mxu0 %v921
      %v1014 = vpop.f32.mrb[0].mxu0
      %v1015 = vadd.f32 0.0, %v1014
      %v1016 = vpop.f32.mrb[0].mxu0
      %1017 = vmatprep.mubr.f32.mxu0 0.0
      %1018 = vmatmul.mubr.f32.gmra.mrb[0].mxu0 %v924
      %v1019 = vpop.f32.mrb[0].mxu0
      %v1020 = vadd.f32 0.0, %v1019
      %v1021 = vpop.f32.mrb[0].mxu0
      %1022 = vmatprep.mubr.f32.mxu0 0.0
      %1023 = vmatmul.mubr.f32.gmra.mrb[0].mxu0 %v927
      %v1024 = vpop.f32.mrb[0].mxu0
      %v1025 = vadd.f32 0.0, %v1024
      %v1026 = vpop.f32.mrb[0].mxu0
      %1027 = vmatprep.mubr.f32.mxu0 0.0
      %1028 = vmatmul.mubr.f32.gmra.mrb[0].mxu0 %v930
      %v1029 = vpop.f32.mrb[0].mxu0
      %v1030 = vadd.f32 0.0, %v1029
      %v1031 = vpop.f32.mrb[0].mxu0
      %1032 = vmatprep.mubr.f32.mxu0 0.0
      %1033 = vmatmul.mubr.f32.gmra.mrb[0].mxu0 %v933
      %v1034 = vpop.f32.mrb[0].mxu0
      %v1035 = vadd.f32 0.0, %v1034
      %v1036 = vpop.f32.mrb[0].mxu0
      %1037 = vmatprep.mubr.f32.mxu0 0.0
      %1038 = vmatmul.mubr.f32.gmra.mrb[0].mxu0 %v936
      %v1039 = vpop.f32.mrb[0].mxu0
      %v1040 = vadd.f32 0.0, %v1039
      %v1041 = vpop.f32.mrb[0].mxu0
      %1042 = vmatprep.mubr.f32.mxu0 0.0
      %1043 = vmatmul.mubr.f32.gmra.mrb[0].mxu0 %v939
      %v1044 = vpop.f32.mrb[0].mxu0
      %v1045 = vadd.f32 0.0, %v1044
      %v1046 = vpop.f32.mrb[0].mxu0
      %1047 = vmatprep.mubr.f32.mxu0 0.0
      %1048 = vmatmul.mubr.f32.gmra.mrb[0].mxu0 %v942
      %v1049 = vpop.f32.mrb[0].mxu0
      %v1050 = vadd.f32 0.0, %v1049
      %v1051 = vpop.f32.mrb[0].mxu0
      %1052 = vdwg.mxu0
      %v1053 = vld [vmem:[%s5] sm:$0xff]
      %v1054 = vld [vmem:[%s5 + $0x8] sm:$0xff]
      %v1055 = vld [vmem:[%s5 + $0x10] sm:$0xff]
      %v1056 = vld [vmem:[%s5 + $0x18] sm:$0xff]
      %v1057 = vld [vmem:[%s5 + $0x20] sm:$0xff]
      %v1058 = vld [vmem:[%s5 + $0x28] sm:$0xff]
      %v1059 = vld [vmem:[%s5 + $0x30] sm:$0xff]
      %v1060 = vld [vmem:[%s5 + $0x38] sm:$0xff]
      %v1061 = vld [vmem:[%s5 + $0x40] sm:$0xff]
      %v1062 = vld [vmem:[%s5 + $0x48] sm:$0xff]
      %v1063 = vld [vmem:[%s5 + $0x50] sm:$0xff]
      %v1064 = vld [vmem:[%s5 + $0x58] sm:$0xff]
      %v1065 = vld [vmem:[%s5 + $0x60] sm:$0xff]
      %v1066 = vld [vmem:[%s5 + $0x68] sm:$0xff]
      %v1067 = vld [vmem:[%s5 + $0x70] sm:$0xff]
      %v1068 = vld [vmem:[%s5 + $0x78] sm:$0xff]
      %s1069 = scalar_lea.vmem %s4, 64
      %v1070 = vld [vmem:[%s1069] sm:$0xff]
      %v1071 = vld [vmem:[%s1069 + $0x8] sm:$0xff]
      %v1072 = vld [vmem:[%s1069 + $0x10] sm:$0xff]
      %v1073 = vld [vmem:[%s1069 + $0x18] sm:$0xff]
      %v1074 = vld [vmem:[%s1069 + $0x20] sm:$0xff]
      %v1075 = vld [vmem:[%s1069 + $0x28] sm:$0xff]
      %v1076 = vld [vmem:[%s1069 + $0x30] sm:$0xff]
      %v1077 = vld [vmem:[%s1069 + $0x38] sm:$0x1f]
      %v1079 = vsel %vm919, %v1070, 0
      %v1082 = vsel %vm919, %v1071, 0
      %v1085 = vsel %vm919, %v1072, 0
      %v1088 = vsel %vm919, %v1073, 0
      %v1091 = vsel %vm919, %v1074, 0
      %v1094 = vsel %vm919, %v1075, 0
      %v1097 = vsel %vm919, %v1076, 0
      %v1100 = vsel %vm919, %v1077, 0
      %1102 = vmatprep.subr.mxu0 0.0
      %1103 = vmatpush1.msra.mxu0 %v907
      %1104 = vmatprep.subr.mxu0 0.0
      %1105 = vmatpush1.msra.mxu0 %v908
      %1106 = vmatprep.subr.mxu0 0.0
      %1107 = vmatpush1.msra.mxu0 %v909
      %1108 = vmatprep.subr.mxu0 0.0
      %1109 = vmatpush1.msra.mxu0 %v946
      %1110 = vmatprep.subr.mxu0 0.0
      %1111 = vmatpush1.msra.mxu0 0.0
      %1112 = vmatprep.subr.mxu0 0.0
      %1113 = vmatpush1.msra.mxu0 0.0
      %1114 = vmatprep.subr.mxu0 0.0
      %1115 = vmatpush1.msra.mxu0 0.0
      %1116 = vmatprep.subr.mxu0 0.0
      %1117 = vmatpush1.msra.mxu0 0.0
      %1118 = vmatprep.subr.mxu0 0.0
      %1119 = vmatpush1.msra.mxu0 0.0
      %1120 = vmatprep.subr.mxu0 0.0
      %1121 = vmatpush1.msra.mxu0 0.0
      %1122 = vmatprep.subr.mxu0 0.0
      %1123 = vmatpush1.msra.mxu0 0.0
      %1124 = vmatprep.subr.mxu0 0.0
      %1125 = vmatpush1.msra.mxu0 0.0
      %1126 = vmatprep.subr.mxu0 0.0
      %1127 = vmatpush1.msra.mxu0 0.0
      %1128 = vmatprep.subr.mxu0 0.0
      %1129 = vmatpush1.msra.mxu0 0.0
      %1130 = vmatprep.subr.mxu0 0.0
      %1131 = vmatpush1.msra.mxu0 0.0
      %1132 = vmatprep.subr.mxu0 0.0
      %1133 = vmatpush1.msra.mxu0 0.0
      %1134 = vmatprep.subr.mxu0 0.0
      %1135 = vmatpush1.msra.mxu0 0.0
      %1136 = vmatprep.subr.mxu0 0.0
      %1137 = vmatpush1.msra.mxu0 0.0
      %1138 = vmatprep.subr.mxu0 0.0
      %1139 = vmatpush1.msra.mxu0 0.0
      %1140 = vmatprep.subr.mxu0 0.0
      %1141 = vmatpush1.msra.mxu0 0.0
      %1142 = vmatprep.subr.mxu0 0.0
      %1143 = vmatpush1.msra.mxu0 0.0
      %1144 = vmatprep.subr.mxu0 0.0
      %1145 = vmatpush1.msra.mxu0 0.0
      %1146 = vmatprep.subr.mxu0 0.0
      %1147 = vmatpush1.msra.mxu0 0.0
      %1148 = vmatprep.subr.mxu0 0.0
      %1149 = vmatpush1.msra.mxu0 0.0
      %1150 = vmatprep.subr.mxu0 0.0
      %1151 = vmatpush1.msra.mxu0 0.0
      %1152 = vmatprep.subr.mxu0 0.0
      %1153 = vmatpush1.msra.mxu0 0.0
      %1154 = vmatprep.subr.mxu0 0.0
      %1155 = vmatpush1.msra.mxu0 0.0
      %1156 = vmatprep.subr.mxu0 0.0
      %1157 = vmatpush1.msra.mxu0 0.0
      %1158 = vmatprep.subr.mxu0 0.0
      %1159 = vmatpush1.msra.mxu0 0.0
      %1160 = vmatprep.subr.mxu0 0.0
      %1161 = vmatpush1.msra.mxu0 0.0
      %1162 = vmatprep.subr.mxu0 0.0
      %1163 = vmatpush1.msra.mxu0 0.0
      %1164 = vmatprep.subr.mxu0 0.0
      %1165 = vmatpush1.msra.mxu0 0.0
      %1166 = vmatprep.mubr.f32.mxu0 0.0
      %1167 = vmatmul.mubr.f32.gmra.mrb[0].mxu0 %v1079
      %v1168 = vpop.f32.mrb[0].mxu0
      %v1169 = vadd.f32 0.0, %v1168
      %v1170 = vpop.f32.mrb[0].mxu0
      %1171 = vmatprep.mubr.f32.mxu0 0.0
      %1172 = vmatmul.mubr.f32.gmra.mrb[0].mxu0 %v1082
      %v1173 = vpop.f32.mrb[0].mxu0
      %v1174 = vadd.f32 0.0, %v1173
      %v1175 = vpop.f32.mrb[0].mxu0
      %1176 = vmatprep.mubr.f32.mxu0 0.0
      %1177 = vmatmul.mubr.f32.gmra.mrb[0].mxu0 %v1085
      %v1178 = vpop.f32.mrb[0].mxu0
      %v1179 = vadd.f32 0.0, %v1178
      %v1180 = vpop.f32.mrb[0].mxu0
      %1181 = vmatprep.mubr.f32.mxu0 0.0
      %1182 = vmatmul.mubr.f32.gmra.mrb[0].mxu0 %v1088
      %v1183 = vpop.f32.mrb[0].mxu0
      %v1184 = vadd.f32 0.0, %v1183
      %v1185 = vpop.f32.mrb[0].mxu0
      %1186 = vmatprep.mubr.f32.mxu0 0.0
      %1187 = vmatmul.mubr.f32.gmra.mrb[0].mxu0 %v1091
      %v1188 = vpop.f32.mrb[0].mxu0
      %v1189 = vadd.f32 0.0, %v1188
      %v1190 = vpop.f32.mrb[0].mxu0
      %1191 = vmatprep.mubr.f32.mxu0 0.0
      %1192 = vmatmul.mubr.f32.gmra.mrb[0].mxu0 %v1094
      %v1193 = vpop.f32.mrb[0].mxu0
      %v1194 = vadd.f32 0.0, %v1193
      %v1195 = vpop.f32.mrb[0].mxu0
      %1196 = vmatprep.mubr.f32.mxu0 0.0
      %1197 = vmatmul.mubr.f32.gmra.mrb[0].mxu0 %v1097
      %v1198 = vpop.f32.mrb[0].mxu0
      %v1199 = vadd.f32 0.0, %v1198
      %v1200 = vpop.f32.mrb[0].mxu0
      %1201 = vmatprep.mubr.f32.mxu0 0.0
      %1202 = vmatmul.mubr.f32.gmra.mrb[0].mxu0 %v1100
      %v1203 = vpop.f32.mrb[0].mxu0
      %v1204 = vadd.f32 0.0, %v1203
      %v1205 = vpop.f32.mrb[0].mxu0
      %1206 = vdwg.mxu0
      %s1207 = scalar_lea.vmem %s5, 128
      %v1208 = vld [vmem:[%s1207] sm:$0xff]
      %v1209 = vld [vmem:[%s1207 + $0x8] sm:$0xff]
      %v1210 = vld [vmem:[%s1207 + $0x10] sm:$0xff]
      %v1211 = vld [vmem:[%s1207 + $0x18] sm:$0xff]
      %v1212 = vld [vmem:[%s1207 + $0x20] sm:$0xff]
      %v1213 = vld [vmem:[%s1207 + $0x28] sm:$0xff]
      %v1214 = vld [vmem:[%s1207 + $0x30] sm:$0xff]
      %v1215 = vld [vmem:[%s1207 + $0x38] sm:$0xff]
      %v1216 = vld [vmem:[%s1207 + $0x40] sm:$0xff]
      %v1217 = vld [vmem:[%s1207 + $0x48] sm:$0xff]
      %v1218 = vld [vmem:[%s1207 + $0x50] sm:$0xff]
      %v1219 = vld [vmem:[%s1207 + $0x58] sm:$0xff]
      %v1220 = vld [vmem:[%s1207 + $0x60] sm:$0xff]
      %v1221 = vld [vmem:[%s1207 + $0x68] sm:$0xff]
      %v1222 = vld [vmem:[%s1207 + $0x70] sm:$0xff]
      %v1223 = vld [vmem:[%s1207 + $0x78] sm:$0xff]
      %1224 = vmatprep.subr.mxu0 0.0
      %1225 = vmatpush1.msra.mxu0 %v1208
      %1226 = vmatprep.subr.mxu0 0.0
      %1227 = vmatpush1.msra.mxu0 %v1209
      %1228 = vmatprep.subr.mxu0 0.0
      %1229 = vmatpush1.msra.mxu0 %v1210
      %1230 = vmatprep.subr.mxu0 0.0
      %1231 = vmatpush1.msra.mxu0 %v1211
      %1232 = vmatprep.subr.mxu0 0.0
      %1233 = vmatpush1.msra.mxu0 %v1212
      %1234 = vmatprep.subr.mxu0 0.0
      %1235 = vmatpush1.msra.mxu0 %v1213
      %1236 = vmatprep.subr.mxu0 0.0
      %1237 = vmatpush1.msra.mxu0 %v1214
      %1238 = vmatprep.subr.mxu0 0.0
      %1239 = vmatpush1.msra.mxu0 %v1215
      %1240 = vmatprep.subr.mxu0 0.0
      %1241 = vmatpush1.msra.mxu0 %v1216
      %1242 = vmatprep.subr.mxu0 0.0
      %1243 = vmatpush1.msra.mxu0 %v1217
      %1244 = vmatprep.subr.mxu0 0.0
      %1245 = vmatpush1.msra.mxu0 %v1218
      %1246 = vmatprep.subr.mxu0 0.0
      %1247 = vmatpush1.msra.mxu0 %v1219
      %1248 = vmatprep.subr.mxu0 0.0
      %1249 = vmatpush1.msra.mxu0 %v1220
      %1250 = vmatprep.subr.mxu0 0.0
      %1251 = vmatpush1.msra.mxu0 %v1221
      %1252 = vmatprep.subr.mxu0 0.0
      %1253 = vmatpush1.msra.mxu0 %v1222
      %1254 = vmatprep.subr.mxu0 0.0
      %1255 = vmatpush1.msra.mxu0 %v1223
      %1256 = vmatprep.subr.mxu0 0.0
      %1257 = vmatpush1.msra.mxu0 0.0
      %1258 = vmatprep.subr.mxu0 0.0
      %1259 = vmatpush1.msra.mxu0 0.0
      %1260 = vmatprep.subr.mxu0 0.0
      %1261 = vmatpush1.msra.mxu0 0.0
      %1262 = vmatprep.subr.mxu0 0.0
      %1263 = vmatpush1.msra.mxu0 0.0
      %1264 = vmatprep.subr.mxu0 0.0
      %1265 = vmatpush1.msra.mxu0 0.0
      %1266 = vmatprep.subr.mxu0 0.0
      %1267 = vmatpush1.msra.mxu0 0.0
      %1268 = vmatprep.subr.mxu0 0.0
      %1269 = vmatpush1.msra.mxu0 0.0
      %1270 = vmatprep.subr.mxu0 0.0
      %1271 = vmatpush1.msra.mxu0 0.0
      %1272 = vmatprep.subr.mxu0 0.0
      %1273 = vmatpush1.msra.mxu0 0.0
      %1274 = vmatprep.subr.mxu0 0.0
      %1275 = vmatpush1.msra.mxu0 0.0
      %1276 = vmatprep.subr.mxu0 0.0
      %1277 = vmatpush1.msra.mxu0 0.0
      %1278 = vmatprep.subr.mxu0 0.0
      %1279 = vmatpush1.msra.mxu0 0.0
      %1280 = vmatprep.subr.mxu0 0.0
      %1281 = vmatpush1.msra.mxu0 0.0
      %1282 = vmatprep.subr.mxu0 0.0
      %1283 = vmatpush1.msra.mxu0 0.0
      %1284 = vmatprep.subr.mxu0 0.0
      %1285 = vmatpush1.msra.mxu0 0.0
      %1286 = vmatprep.subr.mxu0 0.0
      %1287 = vmatpush1.msra.mxu0 0.0
      %1288 = vmatprep.mubr.f32.mxu0 0.0
      %1289 = vmatmul.mubr.f32.gmra.mrb[0].mxu0 %v1169
      %v1290 = vpop.f32.mrb[0].mxu0
      %v1291 = vadd.f32 0.0, %v1290
      %v1292 = vpop.f32.mrb[0].mxu0
      %1293 = vmatprep.mubr.f32.mxu0 0.0
      %1294 = vmatmul.mubr.f32.gmra.mrb[0].mxu0 %v1174
      %v1295 = vpop.f32.mrb[0].mxu0
      %v1296 = vadd.f32 0.0, %v1295
      %v1297 = vpop.f32.mrb[0].mxu0
      %1298 = vmatprep.mubr.f32.mxu0 0.0
      %1299 = vmatmul.mubr.f32.gmra.mrb[0].mxu0 %v1179
      %v1300 = vpop.f32.mrb[0].mxu0
      %v1301 = vadd.f32 0.0, %v1300
      %v1302 = vpop.f32.mrb[0].mxu0
      %1303 = vmatprep.mubr.f32.mxu0 0.0
      %1304 = vmatmul.mubr.f32.gmra.mrb[0].mxu0 %v1184
      %v1305 = vpop.f32.mrb[0].mxu0
      %v1306 = vadd.f32 0.0, %v1305
      %v1307 = vpop.f32.mrb[0].mxu0
      %1308 = vmatprep.mubr.f32.mxu0 0.0
      %1309 = vmatmul.mubr.f32.gmra.mrb[0].mxu0 %v1189
      %v1310 = vpop.f32.mrb[0].mxu0
      %v1311 = vadd.f32 0.0, %v1310
      %v1312 = vpop.f32.mrb[0].mxu0
      %1313 = vmatprep.mubr.f32.mxu0 0.0
      %1314 = vmatmul.mubr.f32.gmra.mrb[0].mxu0 %v1194
      %v1315 = vpop.f32.mrb[0].mxu0
      %v1316 = vadd.f32 0.0, %v1315
      %v1317 = vpop.f32.mrb[0].mxu0
      %1318 = vmatprep.mubr.f32.mxu0 0.0
      %1319 = vmatmul.mubr.f32.gmra.mrb[0].mxu0 %v1199
      %v1320 = vpop.f32.mrb[0].mxu0
      %v1321 = vadd.f32 0.0, %v1320
      %v1322 = vpop.f32.mrb[0].mxu0
      %1323 = vmatprep.mubr.f32.mxu0 0.0
      %1324 = vmatmul.mubr.f32.gmra.mrb[0].mxu0 %v1204
      %v1325 = vpop.f32.mrb[0].mxu0
      %v1326 = vadd.f32 0.0, %v1325
      %v1327 = vpop.f32.mrb[0].mxu0
      %1328 = vdwg.mxu0
      %1329 = vmatprep.subr.mxu0 0.0
      %1330 = vmatpush1.msra.mxu0 %v1053
      %1331 = vmatprep.subr.mxu0 0.0
      %1332 = vmatpush1.msra.mxu0 %v1054
      %1333 = vmatprep.subr.mxu0 0.0
      %1334 = vmatpush1.msra.mxu0 %v1055
      %1335 = vmatprep.subr.mxu0 0.0
      %1336 = vmatpush1.msra.mxu0 %v1056
      %1337 = vmatprep.subr.mxu0 0.0
      %1338 = vmatpush1.msra.mxu0 %v1057
      %1339 = vmatprep.subr.mxu0 0.0
      %1340 = vmatpush1.msra.mxu0 %v1058
      %1341 = vmatprep.subr.mxu0 0.0
      %1342 = vmatpush1.msra.mxu0 %v1059
      %1343 = vmatprep.subr.mxu0 0.0
      %1344 = vmatpush1.msra.mxu0 %v1060
      %1345 = vmatprep.subr.mxu0 0.0
      %1346 = vmatpush1.msra.mxu0 %v1061
      %1347 = vmatprep.subr.mxu0 0.0
      %1348 = vmatpush1.msra.mxu0 %v1062
      %1349 = vmatprep.subr.mxu0 0.0
      %1350 = vmatpush1.msra.mxu0 %v1063
      %1351 = vmatprep.subr.mxu0 0.0
      %1352 = vmatpush1.msra.mxu0 %v1064
      %1353 = vmatprep.subr.mxu0 0.0
      %1354 = vmatpush1.msra.mxu0 %v1065
      %1355 = vmatprep.subr.mxu0 0.0
      %1356 = vmatpush1.msra.mxu0 %v1066
      %1357 = vmatprep.subr.mxu0 0.0
      %1358 = vmatpush1.msra.mxu0 %v1067
      %1359 = vmatprep.subr.mxu0 0.0
      %1360 = vmatpush1.msra.mxu0 %v1068
      %1361 = vmatprep.subr.mxu0 0.0
      %1362 = vmatpush1.msra.mxu0 0.0
      %1363 = vmatprep.subr.mxu0 0.0
      %1364 = vmatpush1.msra.mxu0 0.0
      %1365 = vmatprep.subr.mxu0 0.0
      %1366 = vmatpush1.msra.mxu0 0.0
      %1367 = vmatprep.subr.mxu0 0.0
      %1368 = vmatpush1.msra.mxu0 0.0
      %1369 = vmatprep.subr.mxu0 0.0
      %1370 = vmatpush1.msra.mxu0 0.0
      %1371 = vmatprep.subr.mxu0 0.0
      %1372 = vmatpush1.msra.mxu0 0.0
      %1373 = vmatprep.subr.mxu0 0.0
      %1374 = vmatpush1.msra.mxu0 0.0
      %1375 = vmatprep.subr.mxu0 0.0
      %1376 = vmatpush1.msra.mxu0 0.0
      %1377 = vmatprep.subr.mxu0 0.0
      %1378 = vmatpush1.msra.mxu0 0.0
      %1379 = vmatprep.subr.mxu0 0.0
      %1380 = vmatpush1.msra.mxu0 0.0
      %1381 = vmatprep.subr.mxu0 0.0
      %1382 = vmatpush1.msra.mxu0 0.0
      %1383 = vmatprep.subr.mxu0 0.0
      %1384 = vmatpush1.msra.mxu0 0.0
      %1385 = vmatprep.subr.mxu0 0.0
      %1386 = vmatpush1.msra.mxu0 0.0
      %1387 = vmatprep.subr.mxu0 0.0
      %1388 = vmatpush1.msra.mxu0 0.0
      %1389 = vmatprep.subr.mxu0 0.0
      %1390 = vmatpush1.msra.mxu0 0.0
      %1391 = vmatprep.subr.mxu0 0.0
      %1392 = vmatpush1.msra.mxu0 0.0
      %1393 = vmatprep.mubr.f32.mxu0 0.0
      %1394 = vmatmul.mubr.f32.gmra.mrb[0].mxu0 %v1015
      %v1395 = vpop.f32.mrb[0].mxu0
      %v1396 = vadd.f32 %v1291, %v1395
      %v1397 = vpop.f32.mrb[0].mxu0
      %1398 = vmatprep.mubr.f32.mxu0 0.0
      %1399 = vmatmul.mubr.f32.gmra.mrb[0].mxu0 %v1020
      %v1400 = vpop.f32.mrb[0].mxu0
      %v1401 = vadd.f32 %v1296, %v1400
      %v1402 = vpop.f32.mrb[0].mxu0
      %1403 = vmatprep.mubr.f32.mxu0 0.0
      %1404 = vmatmul.mubr.f32.gmra.mrb[0].mxu0 %v1025
      %v1405 = vpop.f32.mrb[0].mxu0
      %v1406 = vadd.f32 %v1301, %v1405
      %v1407 = vpop.f32.mrb[0].mxu0
      %1408 = vmatprep.mubr.f32.mxu0 0.0
      %1409 = vmatmul.mubr.f32.gmra.mrb[0].mxu0 %v1030
      %v1410 = vpop.f32.mrb[0].mxu0
      %v1411 = vadd.f32 %v1306, %v1410
      %v1412 = vpop.f32.mrb[0].mxu0
      %1413 = vmatprep.mubr.f32.mxu0 0.0
      %1414 = vmatmul.mubr.f32.gmra.mrb[0].mxu0 %v1035
      %v1415 = vpop.f32.mrb[0].mxu0
      %v1416 = vadd.f32 %v1311, %v1415
      %v1417 = vpop.f32.mrb[0].mxu0
      %1418 = vmatprep.mubr.f32.mxu0 0.0
      %1419 = vmatmul.mubr.f32.gmra.mrb[0].mxu0 %v1040
      %v1420 = vpop.f32.mrb[0].mxu0
      %v1421 = vadd.f32 %v1316, %v1420
      %v1422 = vpop.f32.mrb[0].mxu0
      %1423 = vmatprep.mubr.f32.mxu0 0.0
      %1424 = vmatmul.mubr.f32.gmra.mrb[0].mxu0 %v1045
      %v1425 = vpop.f32.mrb[0].mxu0
      %v1426 = vadd.f32 %v1321, %v1425
      %v1427 = vpop.f32.mrb[0].mxu0
      %1428 = vmatprep.mubr.f32.mxu0 0.0
      %1429 = vmatmul.mubr.f32.gmra.mrb[0].mxu0 %v1050
      %v1430 = vpop.f32.mrb[0].mxu0
      %v1431 = vadd.f32 %v1326, %v1430
      %v1432 = vpop.f32.mrb[0].mxu0
      %1433 = vdwg.mxu0
      %s1434 = scalar_lea.vmem %s4, 128
      %v1435 = vld [vmem:[%s1434] sm:$0xff]
      %v1436 = vld [vmem:[%s1434 + $0x8] sm:$0xff]
      %v1437 = vld [vmem:[%s1434 + $0x10] sm:$0xff]
      %v1438 = vld [vmem:[%s1434 + $0x18] sm:$0xff]
      %v1439 = vld [vmem:[%s1434 + $0x20] sm:$0xff]
      %v1440 = vld [vmem:[%s1434 + $0x28] sm:$0xff]
      %v1441 = vld [vmem:[%s1434 + $0x30] sm:$0xff]
      %v1442 = vld [vmem:[%s1434 + $0x38] sm:$0x1f]
      %v1444 = vsel %vm919, %v1435, 0
      %v1447 = vsel %vm919, %v1436, 0
      %v1450 = vsel %vm919, %v1437, 0
      %v1453 = vsel %vm919, %v1438, 0
      %v1456 = vsel %vm919, %v1439, 0
      %v1459 = vsel %vm919, %v1440, 0
      %v1462 = vsel %vm919, %v1441, 0
      %v1465 = vsel %vm919, %v1442, 0
      %1467 = vmatprep.subr.mxu0 0.0
      %1468 = vmatpush1.msra.mxu0 %v907
      %1469 = vmatprep.subr.mxu0 0.0
      %1470 = vmatpush1.msra.mxu0 %v908
      %1471 = vmatprep.subr.mxu0 0.0
      %1472 = vmatpush1.msra.mxu0 %v909
      %1473 = vmatprep.subr.mxu0 0.0
      %1474 = vmatpush1.msra.mxu0 %v946
      %1475 = vmatprep.subr.mxu0 0.0
      %1476 = vmatpush1.msra.mxu0 0.0
      %1477 = vmatprep.subr.mxu0 0.0
      %1478 = vmatpush1.msra.mxu0 0.0
      %1479 = vmatprep.subr.mxu0 0.0
      %1480 = vmatpush1.msra.mxu0 0.0
      %1481 = vmatprep.subr.mxu0 0.0
      %1482 = vmatpush1.msra.mxu0 0.0
      %1483 = vmatprep.subr.mxu0 0.0
      %1484 = vmatpush1.msra.mxu0 0.0
      %1485 = vmatprep.subr.mxu0 0.0
      %1486 = vmatpush1.msra.mxu0 0.0
      %1487 = vmatprep.subr.mxu0 0.0
      %1488 = vmatpush1.msra.mxu0 0.0
      %1489 = vmatprep.subr.mxu0 0.0
      %1490 = vmatpush1.msra.mxu0 0.0
      %1491 = vmatprep.subr.mxu0 0.0
      %1492 = vmatpush1.msra.mxu0 0.0
      %1493 = vmatprep.subr.mxu0 0.0
      %1494 = vmatpush1.msra.mxu0 0.0
      %1495 = vmatprep.subr.mxu0 0.0
      %1496 = vmatpush1.msra.mxu0 0.0
      %1497 = vmatprep.subr.mxu0 0.0
      %1498 = vmatpush1.msra.mxu0 0.0
      %1499 = vmatprep.subr.mxu0 0.0
      %1500 = vmatpush1.msra.mxu0 0.0
      %1501 = vmatprep.subr.mxu0 0.0
      %1502 = vmatpush1.msra.mxu0 0.0
      %1503 = vmatprep.subr.mxu0 0.0
      %1504 = vmatpush1.msra.mxu0 0.0
      %1505 = vmatprep.subr.mxu0 0.0
      %1506 = vmatpush1.msra.mxu0 0.0
      %1507 = vmatprep.subr.mxu0 0.0
      %1508 = vmatpush1.msra.mxu0 0.0
      %1509 = vmatprep.subr.mxu0 0.0
      %1510 = vmatpush1.msra.mxu0 0.0
      %1511 = vmatprep.subr.mxu0 0.0
      %1512 = vmatpush1.msra.mxu0 0.0
      %1513 = vmatprep.subr.mxu0 0.0
      %1514 = vmatpush1.msra.mxu0 0.0
      %1515 = vmatprep.subr.mxu0 0.0
      %1516 = vmatpush1.msra.mxu0 0.0
      %1517 = vmatprep.subr.mxu0 0.0
      %1518 = vmatpush1.msra.mxu0 0.0
      %1519 = vmatprep.subr.mxu0 0.0
      %1520 = vmatpush1.msra.mxu0 0.0
      %1521 = vmatprep.subr.mxu0 0.0
      %1522 = vmatpush1.msra.mxu0 0.0
      %1523 = vmatprep.subr.mxu0 0.0
      %1524 = vmatpush1.msra.mxu0 0.0
      %1525 = vmatprep.subr.mxu0 0.0
      %1526 = vmatpush1.msra.mxu0 0.0
      %1527 = vmatprep.subr.mxu0 0.0
      %1528 = vmatpush1.msra.mxu0 0.0
      %1529 = vmatprep.subr.mxu0 0.0
      %1530 = vmatpush1.msra.mxu0 0.0
      %1531 = vmatprep.mubr.f32.mxu0 0.0
      %1532 = vmatmul.mubr.f32.gmra.mrb[0].mxu0 %v1444
      %v1533 = vpop.f32.mrb[0].mxu0
      %v1534 = vadd.f32 0.0, %v1533
      %v1535 = vpop.f32.mrb[0].mxu0
      %1536 = vmatprep.mubr.f32.mxu0 0.0
      %1537 = vmatmul.mubr.f32.gmra.mrb[0].mxu0 %v1447
      %v1538 = vpop.f32.mrb[0].mxu0
      %v1539 = vadd.f32 0.0, %v1538
      %v1540 = vpop.f32.mrb[0].mxu0
      %1541 = vmatprep.mubr.f32.mxu0 0.0
      %1542 = vmatmul.mubr.f32.gmra.mrb[0].mxu0 %v1450
      %v1543 = vpop.f32.mrb[0].mxu0
      %v1544 = vadd.f32 0.0, %v1543
      %v1545 = vpop.f32.mrb[0].mxu0
      %1546 = vmatprep.mubr.f32.mxu0 0.0
      %1547 = vmatmul.mubr.f32.gmra.mrb[0].mxu0 %v1453
      %v1548 = vpop.f32.mrb[0].mxu0
      %v1549 = vadd.f32 0.0, %v1548
      %v1550 = vpop.f32.mrb[0].mxu0
      %1551 = vmatprep.mubr.f32.mxu0 0.0
      %1552 = vmatmul.mubr.f32.gmra.mrb[0].mxu0 %v1456
      %v1553 = vpop.f32.mrb[0].mxu0
      %v1554 = vadd.f32 0.0, %v1553
      %v1555 = vpop.f32.mrb[0].mxu0
      %1556 = vmatprep.mubr.f32.mxu0 0.0
      %1557 = vmatmul.mubr.f32.gmra.mrb[0].mxu0 %v1459
      %v1558 = vpop.f32.mrb[0].mxu0
      %v1559 = vadd.f32 0.0, %v1558
      %v1560 = vpop.f32.mrb[0].mxu0
      %1561 = vmatprep.mubr.f32.mxu0 0.0
      %1562 = vmatmul.mubr.f32.gmra.mrb[0].mxu0 %v1462
      %v1563 = vpop.f32.mrb[0].mxu0
      %v1564 = vadd.f32 0.0, %v1563
      %v1565 = vpop.f32.mrb[0].mxu0
      %1566 = vmatprep.mubr.f32.mxu0 0.0
      %1567 = vmatmul.mubr.f32.gmra.mrb[0].mxu0 %v1465
      %v1568 = vpop.f32.mrb[0].mxu0
      %v1569 = vadd.f32 0.0, %v1568
      %v1570 = vpop.f32.mrb[0].mxu0
      %1571 = vdwg.mxu0
      %s1572 = scalar_lea.vmem %s5, 256
      %v1573 = vld [vmem:[%s1572] sm:$0xff]
      %v1574 = vld [vmem:[%s1572 + $0x8] sm:$0xff]
      %v1575 = vld [vmem:[%s1572 + $0x10] sm:$0xff]
      %v1576 = vld [vmem:[%s1572 + $0x18] sm:$0xff]
      %v1577 = vld [vmem:[%s1572 + $0x20] sm:$0xff]
      %v1578 = vld [vmem:[%s1572 + $0x28] sm:$0xff]
      %v1579 = vld [vmem:[%s1572 + $0x30] sm:$0xff]
      %v1580 = vld [vmem:[%s1572 + $0x38] sm:$0xff]
      %v1581 = vld [vmem:[%s1572 + $0x40] sm:$0xff]
      %v1582 = vld [vmem:[%s1572 + $0x48] sm:$0xff]
      %v1583 = vld [vmem:[%s1572 + $0x50] sm:$0xff]
      %v1584 = vld [vmem:[%s1572 + $0x58] sm:$0xff]
      %v1585 = vld [vmem:[%s1572 + $0x60] sm:$0xff]
      %v1586 = vld [vmem:[%s1572 + $0x68] sm:$0xff]
      %v1587 = vld [vmem:[%s1572 + $0x70] sm:$0xff]
      %v1588 = vld [vmem:[%s1572 + $0x78] sm:$0xff]
      %1589 = vmatprep.subr.mxu0 0.0
      %1590 = vmatpush1.msra.mxu0 %v1573
      %1591 = vmatprep.subr.mxu0 0.0
      %1592 = vmatpush1.msra.mxu0 %v1574
      %1593 = vmatprep.subr.mxu0 0.0
      %1594 = vmatpush1.msra.mxu0 %v1575
      %1595 = vmatprep.subr.mxu0 0.0
      %1596 = vmatpush1.msra.mxu0 %v1576
      %1597 = vmatprep.subr.mxu0 0.0
      %1598 = vmatpush1.msra.mxu0 %v1577
      %1599 = vmatprep.subr.mxu0 0.0
      %1600 = vmatpush1.msra.mxu0 %v1578
      %1601 = vmatprep.subr.mxu0 0.0
      %1602 = vmatpush1.msra.mxu0 %v1579
      %1603 = vmatprep.subr.mxu0 0.0
      %1604 = vmatpush1.msra.mxu0 %v1580
      %1605 = vmatprep.subr.mxu0 0.0
      %1606 = vmatpush1.msra.mxu0 %v1581
      %1607 = vmatprep.subr.mxu0 0.0
      %1608 = vmatpush1.msra.mxu0 %v1582
      %1609 = vmatprep.subr.mxu0 0.0
      %1610 = vmatpush1.msra.mxu0 %v1583
      %1611 = vmatprep.subr.mxu0 0.0
      %1612 = vmatpush1.msra.mxu0 %v1584
      %1613 = vmatprep.subr.mxu0 0.0
      %1614 = vmatpush1.msra.mxu0 %v1585
      %1615 = vmatprep.subr.mxu0 0.0
      %1616 = vmatpush1.msra.mxu0 %v1586
      %1617 = vmatprep.subr.mxu0 0.0
      %1618 = vmatpush1.msra.mxu0 %v1587
      %1619 = vmatprep.subr.mxu0 0.0
      %1620 = vmatpush1.msra.mxu0 %v1588
      %1621 = vmatprep.subr.mxu0 0.0
      %1622 = vmatpush1.msra.mxu0 0.0
      %1623 = vmatprep.subr.mxu0 0.0
      %1624 = vmatpush1.msra.mxu0 0.0
      %1625 = vmatprep.subr.mxu0 0.0
      %1626 = vmatpush1.msra.mxu0 0.0
      %1627 = vmatprep.subr.mxu0 0.0
      %1628 = vmatpush1.msra.mxu0 0.0
      %1629 = vmatprep.subr.mxu0 0.0
      %1630 = vmatpush1.msra.mxu0 0.0
      %1631 = vmatprep.subr.mxu0 0.0
      %1632 = vmatpush1.msra.mxu0 0.0
      %1633 = vmatprep.subr.mxu0 0.0
      %1634 = vmatpush1.msra.mxu0 0.0
      %1635 = vmatprep.subr.mxu0 0.0
      %1636 = vmatpush1.msra.mxu0 0.0
      %1637 = vmatprep.subr.mxu0 0.0
      %1638 = vmatpush1.msra.mxu0 0.0
      %1639 = vmatprep.subr.mxu0 0.0
      %1640 = vmatpush1.msra.mxu0 0.0
      %1641 = vmatprep.subr.mxu0 0.0
      %1642 = vmatpush1.msra.mxu0 0.0
      %1643 = vmatprep.subr.mxu0 0.0
      %1644 = vmatpush1.msra.mxu0 0.0
      %1645 = vmatprep.subr.mxu0 0.0
      %1646 = vmatpush1.msra.mxu0 0.0
      %1647 = vmatprep.subr.mxu0 0.0
      %1648 = vmatpush1.msra.mxu0 0.0
      %1649 = vmatprep.subr.mxu0 0.0
      %1650 = vmatpush1.msra.mxu0 0.0
      %1651 = vmatprep.subr.mxu0 0.0
      %1652 = vmatpush1.msra.mxu0 0.0
      %1653 = vmatprep.mubr.f32.mxu0 0.0
      %1654 = vmatmul.mubr.f32.gmra.mrb[0].mxu0 %v1534
      %v1655 = vpop.f32.mrb[0].mxu0
      %v1656 = vadd.f32 0.0, %v1655
      %v1657 = vpop.f32.mrb[0].mxu0
      %1658 = vmatprep.mubr.f32.mxu0 0.0
      %1659 = vmatmul.mubr.f32.gmra.mrb[0].mxu0 %v1539
      %v1660 = vpop.f32.mrb[0].mxu0
      %v1661 = vadd.f32 0.0, %v1660
      %v1662 = vpop.f32.mrb[0].mxu0
      %1663 = vmatprep.mubr.f32.mxu0 0.0
      %1664 = vmatmul.mubr.f32.gmra.mrb[0].mxu0 %v1544
      %v1665 = vpop.f32.mrb[0].mxu0
      %v1666 = vadd.f32 0.0, %v1665
      %v1667 = vpop.f32.mrb[0].mxu0
      %1668 = vmatprep.mubr.f32.mxu0 0.0
      %1669 = vmatmul.mubr.f32.gmra.mrb[0].mxu0 %v1549
      %v1670 = vpop.f32.mrb[0].mxu0
      %v1671 = vadd.f32 0.0, %v1670
      %v1672 = vpop.f32.mrb[0].mxu0
      %1673 = vmatprep.mubr.f32.mxu0 0.0
      %1674 = vmatmul.mubr.f32.gmra.mrb[0].mxu0 %v1554
      %v1675 = vpop.f32.mrb[0].mxu0
      %v1676 = vadd.f32 0.0, %v1675
      %v1677 = vpop.f32.mrb[0].mxu0
      %1678 = vmatprep.mubr.f32.mxu0 0.0
      %1679 = vmatmul.mubr.f32.gmra.mrb[0].mxu0 %v1559
      %v1680 = vpop.f32.mrb[0].mxu0
      %v1681 = vadd.f32 0.0, %v1680
      %v1682 = vpop.f32.mrb[0].mxu0
      %1683 = vmatprep.mubr.f32.mxu0 0.0
      %1684 = vmatmul.mubr.f32.gmra.mrb[0].mxu0 %v1564
      %v1685 = vpop.f32.mrb[0].mxu0
      %v1686 = vadd.f32 0.0, %v1685
      %v1687 = vpop.f32.mrb[0].mxu0
      %1688 = vmatprep.mubr.f32.mxu0 0.0
      %1689 = vmatmul.mubr.f32.gmra.mrb[0].mxu0 %v1569
      %v1690 = vpop.f32.mrb[0].mxu0
      %v1691 = vadd.f32 0.0, %v1690
      %v1692 = vpop.f32.mrb[0].mxu0
      %1693 = vdwg.mxu0
      %v1694 = vadd.f32 %v1396, %v1656
      %v1695 = vadd.f32 %v1401, %v1661
      %v1696 = vadd.f32 %v1406, %v1666
      %v1697 = vadd.f32 %v1411, %v1671
      %v1698 = vadd.f32 %v1416, %v1676
      %v1699 = vadd.f32 %v1421, %v1681
      %v1700 = vadd.f32 %v1426, %v1686
      %v1701 = vadd.f32 %v1431, %v1691
      %v1702 = vld [vmem:[%s6] sm:$0x1]
      %v1704 = vlaneseq
      %v1705 = vshrl.u32 %v1704, 7
      %v1706 = vsub.s32 0, %v1705
      %v1707 = vrot.slane %v1702, %v1706
      %v1709 = vadd.f32 %v1694, %v1707
      %v1710 = vadd.f32 %v1695, %v1707
      %v1711 = vadd.f32 %v1696, %v1707
      %v1712 = vadd.f32 %v1697, %v1707
      %v1713 = vadd.f32 %v1698, %v1707
      %v1714 = vadd.f32 %v1699, %v1707
      %v1715 = vadd.f32 %v1700, %v1707
      %v1716 = vadd.f32 %v1701, %v1707
      %vm1717 = vcmask 498688
      %1718 = vst.msk [vmem:[%s278] sm:$0xff] %vm1717, %v1709
      %1719 = vst.msk [vmem:[%s278 + $0x8] sm:$0xff] %vm1717, %v1710
      %1720 = vst.msk [vmem:[%s278 + $0x10] sm:$0xff] %vm1717, %v1711
      %1721 = vst.msk [vmem:[%s278 + $0x18] sm:$0xff] %vm1717, %v1712
      %1722 = vst.msk [vmem:[%s278 + $0x20] sm:$0xff] %vm1717, %v1713
      %1723 = vst.msk [vmem:[%s278 + $0x28] sm:$0xff] %vm1717, %v1714
      %1724 = vst.msk [vmem:[%s278 + $0x30] sm:$0xff] %vm1717, %v1715
      %vm1725 = vcmask 495616
      %1726 = vst.msk [vmem:[%s278 + $0x38] sm:$0x1f] %vm1725, %v1716
      %1735 = vrot.lane.b32.xlu0 %v1709, 67
      %v1736 = vpop.permute.xlu0 %1735
      %1737 = vrot.lane.b32.xlu0 %v1710, 67
      %v1738 = vpop.permute.xlu0 %1737
      %1739 = vrot.lane.b32.xlu0 %v1711, 67
      %v1740 = vpop.permute.xlu0 %1739
      %1741 = vrot.lane.b32.xlu0 %v1712, 67
      %v1742 = vpop.permute.xlu0 %1741
      %1743 = vrot.lane.b32.xlu0 %v1713, 67
      %v1744 = vpop.permute.xlu0 %1743
      %1745 = vrot.lane.b32.xlu0 %v1714, 67
      %v1746 = vpop.permute.xlu0 %1745
      %1747 = vrot.lane.b32.xlu0 %v1715, 67
      %v1748 = vpop.permute.xlu0 %1747
      %1749 = vrot.lane.b32.xlu0 %v1716, 67
      %v1750 = vpop.permute.xlu0 %1749
      %s1759 = scalar_lea.vmem %s278, 64
      %1760 = vst.msk [vmem:[%s1759] sm:$0xff] %vm1717, %v1736
      %1761 = vst.msk [vmem:[%s1759 + $0x8] sm:$0xff] %vm1717, %v1738
      %1762 = vst.msk [vmem:[%s1759 + $0x10] sm:$0xff] %vm1717, %v1740
      %1763 = vst.msk [vmem:[%s1759 + $0x18] sm:$0xff] %vm1717, %v1742
      %1764 = vst.msk [vmem:[%s1759 + $0x20] sm:$0xff] %vm1717, %v1744
      %1765 = vst.msk [vmem:[%s1759 + $0x28] sm:$0xff] %vm1717, %v1746
      %1766 = vst.msk [vmem:[%s1759 + $0x30] sm:$0xff] %vm1717, %v1748
      %1767 = vst.msk [vmem:[%s1759 + $0x38] sm:$0x1f] %vm1725, %v1750
      %p1768 = scmp.lt.s32.totalorder %s18, 1
      %s1769 = scalar_select %p1768, %s18, 1
      %s1770 = smul.addr %s1769, 16
      %s1771 = smul.addr %s1770, 8
      %s1772 = scalar_lea.vmem %s7, %s1771
      // Predicated region
      $region49: #{decoder_forward.1} parent=47 // pred_check
        %p1773 = pneg %p188
      $region50: #{decoder_forward.1} parent=47 // pred_check_branch
        %1775 = sbr.rel (%p1773) target = $region52
      $region51: #{decoder_forward.1} parent=47 // pred_region
        _
      $region52: #{decoder_forward.1} parent=47 // pred_fallthru
        _
    $region48: #{decoder_forward.1} parent=5 // pred_fallthru
      _
    %p1776 = scmp.le.s32.totalorder 2, %s13
    // Predicated region
    $region53: #{decoder_forward.1} parent=5 // pred_check
      %p1777 = pneg %p1776
    $region54: #{decoder_forward.1} parent=5 // pred_check_branch
      %1779 = sbr.rel (%p1777) target = $region56
    $region55: #{decoder_forward.1} parent=5 // pred_region
      %s1780 = ssub.s32 %s13, 2
      // Predicated region
      $region57: #{decoder_forward.1} parent=55 // pred_check
        %p1781 = pneg %p194
      $region58: #{decoder_forward.1} parent=55 // pred_check_branch
        %1783 = sbr.rel (%p1781) target = $region60
      $region59: #{decoder_forward.1} parent=55 // pred_region
        %p1784 = scmp.lt.s32.totalorder %s19, 1
        %s1785 = scalar_select %p1784, %s19, 1
        %s1786 = smul.addr %s1785, 16
        %s1787 = smul.addr %s1786, 8
        %s1788 = scalar_lea.vmem %s7, %s1787
      $region60: #{decoder_forward.1} parent=55 // pred_fallthru
        _
    $region56: #{decoder_forward.1} parent=5 // pred_fallthru
      _
  $region6: #{decoder_forward.1} parent=0 // loop_footer
    %s17 = sadd.s32 1, %s13
  $region7: #{decoder_forward.1} parent=0 // loop_footer_branch
    %12 = sbr.rel target = $region3
  $region8: #{decoder_forward.1} parent=0 // loop_exit
    _

</llo_original>
